<compile_context>
chip_gen: v5e
topology: v5e:2x2
jax: 0.10.0
libtpu: 0.0.40
codegen_flags: <defaults>
</compile_context>

<pallas_src>
import functools

import jax
import jax.numpy as jnp
from jax import lax
from jax.experimental import pallas as pl
from jax.experimental.pallas import tpu as pltpu


def bottleneck_kernel(x_ref, mask_ref, w1_ref, b1_ref, w2_ref, b2_ref,
                      w3_ref, b3_ref, o_ref, *, W):
    bhw = x_ref.shape[1]            # B*HW lanes in this step's slab
    mxu_dt = w1_ref.dtype           # bf16 MXU operands (f32 accumulation)

    x = x_ref[...]                  # (Cin, B*HW) f32, lane-dense

    # ---- conv1 (1x1, BN1 scale pre-folded into rows) + bias + relu ----
    h1 = jnp.dot(w1_ref[...], x.astype(mxu_dt),
                 preferred_element_type=jnp.float32)
    h1 = jnp.maximum(h1 + b1_ref[...], 0.0)            # (width, B*HW) f32

    # ---- conv2 (3x3, stride=1, pad=1): 9 accumulated tap matmuls ----
    # Tap (dy, dx) is h1 shifted by s = (dy-1)*W + (dx-1) along the flat lane
    # axis (XLU lane rotate).  Out-of-image positions -- including rolls that
    # leak across sample boundaries inside the B-sample slab -- are zeroed by
    # the precomputed per-tap masks.  No VMEM scratch round trip.
    h2 = None
    for dy in range(3):
        for dx in range(3):
            t = dy * 3 + dx
            s = (dy - 1) * W + (dx - 1)
            if s == 0:
                tap = h1
            else:
                tap = pltpu.roll(h1, (-s) % bhw, axis=1) * mask_ref[t:t + 1, :]
            d = jnp.dot(w2_ref[t], tap.astype(mxu_dt),
                        preferred_element_type=jnp.float32)
            h2 = d if h2 is None else h2 + d
    h2 = jnp.maximum(h2 + b2_ref[...], 0.0)             # (width, B*HW) f32

    # ---- conv3 (1x1) + bias + residual add (exact f32 identity) + relu ----
    h3 = jnp.dot(w3_ref[...], h2.astype(mxu_dt),
                 preferred_element_type=jnp.float32)
    o_ref[...] = jnp.maximum(h3 + b3_ref[...] + x, 0.0).astype(o_ref.dtype)


def _tap_masks(H, W, B):
    """(9, B*HW) f32 validity masks for the 3x3 taps (1 inside image, else 0)."""
    HW = H * W
    pos = jnp.arange(HW, dtype=jnp.int32)
    y = pos // W
    x = pos % W
    rows = []
    for oy in (-1, 0, 1):
        for ox in (-1, 0, 1):
            m = jnp.ones((HW,), dtype=bool)
            if oy < 0:
                m = m & (y >= -oy)
            if oy > 0:
                m = m & (y < H - oy)
            if ox < 0:
                m = m & (x >= -ox)
            if ox > 0:
                m = m & (x < W - ox)
            rows.append(m)
    mask = jnp.stack(rows, axis=0).astype(jnp.float32)   # (9, HW)
    return jnp.tile(mask, (1, B))                         # (9, B*HW)


def bottleneck_pallas(x_nchw, params, *, samples_per_step=None):
    """x_nchw: (N, Cin, H, W) float32.  Returns (N, Cout, H, W)."""
    w1m, b1, w2t, b2, w3m, b3 = params
    N, Cin, H, W = x_nchw.shape
    HW = H * W
    Cout = w3m.shape[0]

    if samples_per_step is None:
        # Largest B that still leaves >= 2 grid steps (v7x megacore split).
        samples_per_step = N // 2 if (N >= 2 and N % 2 == 0) else max(N, 1)
    B = samples_per_step
    assert N % B == 0, "samples_per_step must divide N"
    BHW = B * HW
    assert BHW % 128 == 0, "B*H*W must be a multiple of 128 lanes"
    steps = N // B

    # Lane-batched slab: channels on sublanes, (sample, pixel) on lanes.
    x_slab = x_nchw.reshape(N, Cin, HW).transpose(1, 0, 2).reshape(Cin, N * HW)
    masks = _tap_masks(H, W, B)                          # (9, B*HW) f32

    def full_spec(a):
        nd = a.ndim
        return pl.BlockSpec(a.shape, lambda i, _nd=nd: (0,) * _nd)

    kernel = functools.partial(bottleneck_kernel, W=W)
    out = pl.pallas_call(
        kernel,
        out_shape=jax.ShapeDtypeStruct((Cout, N * HW), x_nchw.dtype),
        grid_spec=pltpu.PrefetchScalarGridSpec(
            num_scalar_prefetch=0,
            grid=(steps,),                               # B samples per step
            in_specs=[pl.BlockSpec((Cin, BHW), lambda i: (0, i)),
                      full_spec(masks),
                      full_spec(w1m), full_spec(b1),
                      full_spec(w2t), full_spec(b2),
                      full_spec(w3m), full_spec(b3)],
            out_specs=pl.BlockSpec((Cout, BHW), lambda i: (0, i)),
        ),
        compiler_params=pltpu.CompilerParams(
            dimension_semantics=("parallel",)),          # v7x: both TCs share steps
    )(x_slab, masks, w1m, b1, w2t, b2, w3m, b3)
    return out.reshape(Cout, N, HW).transpose(1, 0, 2).reshape(N, Cout, H, W)


def fold_bn(bn, eps=1e-5):
    gamma, beta, mean, var = bn
    scale = gamma / jnp.sqrt(var + eps)
    bias = beta - mean * scale
    return scale.astype(jnp.float32), bias.astype(jnp.float32)


def prepare_params(torch_params, eps=1e-5, mxu_dtype=jnp.bfloat16):
    """PyTorch-layout conv weights + eval-mode BN -> folded kernel operands."""
    (w1, bn1), (w2, bn2), (w3, bn3) = torch_params
    width, cin = w1.shape[0], w1.shape[1]
    cout = w3.shape[0]
    s1, b1 = fold_bn(bn1, eps)
    s2, b2 = fold_bn(bn2, eps)
    s3, b3 = fold_bn(bn3, eps)
    # Fold BN scales into the conv weights' output-channel rows (biases stay).
    w1m = (w1.reshape(width, cin) * s1[:, None]).astype(mxu_dtype)
    # OIHW (co,ci,kh,kw) -> (kh,kw,co,ci) -> (9, co, ci): tap t = kh*3 + kw
    # matches the kernel's dy/dx loop order.
    w2t = jnp.transpose(w2, (2, 3, 0, 1)).reshape(9, width, width)
    w2t = (w2t * s2[None, :, None]).astype(mxu_dtype)
    w3m = (w3.reshape(cout, width) * s3[:, None]).astype(mxu_dtype)
    return (w1m, b1.reshape(width, 1), w2t, b2.reshape(width, 1),
            w3m, b3.reshape(cout, 1))


def bottleneck_ref(x, torch_params, eps=1e-5):
    """Plain-JAX NCHW reference matching the PyTorch module (eval-mode BN)."""
    (w1, bn1), (w2, bn2), (w3, bn3) = torch_params

    def bn(h, p):
        gamma, beta, mean, var = (a.reshape(1, -1, 1, 1) for a in p)
        return (h - mean) / jnp.sqrt(var + eps) * gamma + beta

    def conv(h, w, pad):
        return lax.conv_general_dilated(
            h, w, (1, 1), pad, dimension_numbers=('NCHW', 'OIHW', 'NCHW'))

    identity = x
    h = jax.nn.relu(bn(conv(x, w1, 'VALID'), bn1))
    h = jax.nn.relu(bn(conv(h, w2, 'SAME'), bn2))
    h = bn(conv(h, w3, 'VALID'), bn3)
    return jax.nn.relu(h + identity)


if __name__ == "__main__":
    key = jax.random.PRNGKey(0)
    N, planes, H, W = 4, 4, 16, 16
    expansion = 4
    inplanes = planes * expansion      # 16 -> identity add valid (stride=1, no downsample)
    width = planes                     # base_width=64, groups=1

    ks = jax.random.split(key, 7)
    x = jax.random.normal(ks[0], (N, inplanes, H, W), jnp.float32)

    def bn_params(k, c):
        kk = jax.random.split(k, 4)
        gamma = 1.0 + 0.1 * jax.random.normal(kk[0], (c,), jnp.float32)
        beta = 0.1 * jax.random.normal(kk[1], (c,), jnp.float32)
        mean = 0.1 * jax.random.normal(kk[2], (c,), jnp.float32)
        var = jnp.abs(jax.random.normal(kk[3], (c,), jnp.float32)) + 0.5
        return (gamma, beta, mean, var)

    # PyTorch-layout conv weights (OIHW, bias=False) + eval-mode BN params.
    # TODO(synk): training-mode BatchNorm (batch statistics) is not reproduced.
    w1 = 0.1 * jax.random.normal(ks[1], (width, inplanes, 1, 1), jnp.float32)
    w2 = 0.1 * jax.random.normal(ks[2], (width, width, 3, 3), jnp.float32)
    w3 = 0.1 * jax.random.normal(ks[3], (inplanes, width, 1, 1), jnp.float32)
    torch_params = ((w1, bn_params(ks[4], width)),
                    (w2, bn_params(ks[5], width)),
                    (w3, bn_params(ks[6], inplanes)))

    params = prepare_params(torch_params)            # bf16 MXU weights, f32 biases

    out = jax.block_until_ready(bottleneck_pallas(x, params))
    ref = bottleneck_ref(x, torch_params)
    assert out.shape == (N, inplanes, H, W)
    err = float(jnp.max(jnp.abs(out - ref)))
    # bf16 MXU operands (f32 accumulation) -> looser tolerance than pure f32.
    assert jnp.allclose(out, ref, atol=5e-2, rtol=5e-2), f"max err {err}"
    print("KERNEL_OK")
</pallas_src>

<mosaic_0001>
module attributes {stable_mosaic.version = 11 : i64} {
  func.func @bottleneck_kernel(%arg0: i32, %arg1: memref<16x512xf32, #tpu.memory_space<vmem>>, %arg2: memref<9x512xf32, #tpu.memory_space<vmem>>, %arg3: memref<4x16xbf16, #tpu.memory_space<vmem>>, %arg4: memref<4x1xf32, #tpu.memory_space<vmem>>, %arg5: memref<9x4x4xbf16, #tpu.memory_space<vmem>>, %arg6: memref<4x1xf32, #tpu.memory_space<vmem>>, %arg7: memref<16x4xbf16, #tpu.memory_space<vmem>>, %arg8: memref<16x1xf32, #tpu.memory_space<vmem>>, %arg9: memref<16x512xf32, #tpu.memory_space<vmem>>) attributes {dimension_semantics = [#tpu.dimension_semantics<parallel>], iteration_bounds = array<i64: 2>, scalar_prefetch = 0 : i64, scratch_operands = 0 : i64, tpu.core_type = #tpu.core_type<tc>, window_params = [{transform_indices = @transform_0, window_bounds = array<i64: 16, 512>}, {pipeline_mode = #tpu.pipeline_mode<synchronous>, transform_indices = @transform_1, window_bounds = array<i64: 9, 512>}, {pipeline_mode = #tpu.pipeline_mode<synchronous>, transform_indices = @transform_2, window_bounds = array<i64: 4, 16>}, {pipeline_mode = #tpu.pipeline_mode<synchronous>, transform_indices = @transform_3, window_bounds = array<i64: 4, 1>}, {pipeline_mode = #tpu.pipeline_mode<synchronous>, transform_indices = @transform_4, window_bounds = array<i64: 9, 4, 4>}, {pipeline_mode = #tpu.pipeline_mode<synchronous>, transform_indices = @transform_5, window_bounds = array<i64: 4, 1>}, {pipeline_mode = #tpu.pipeline_mode<synchronous>, transform_indices = @transform_6, window_bounds = array<i64: 16, 4>}, {pipeline_mode = #tpu.pipeline_mode<synchronous>, transform_indices = @transform_7, window_bounds = array<i64: 16, 1>}, {transform_indices = @transform_8, window_bounds = array<i64: 16, 512>}]} {
    %c0 = arith.constant 0 : index
    %c0_0 = arith.constant 0 : index
    %0 = vector.load %arg1[%c0, %c0_0] : memref<16x512xf32, #tpu.memory_space<vmem>>, vector<16x512xf32>
    %c0_1 = arith.constant 0 : index
    %c0_2 = arith.constant 0 : index
    %1 = vector.load %arg3[%c0_1, %c0_2] : memref<4x16xbf16, #tpu.memory_space<vmem>>, vector<4x16xbf16>
    %2 = arith.truncf %0 : vector<16x512xf32> to vector<16x512xbf16>
    %cst = arith.constant dense<0.000000e+00> : vector<4x512xf32>
    %3 = tpu.matmul %1, %2, %cst {dimension_numbers = #tpu.dot_dimension_numbers<[1], [0], [0], [1], [0, 0, 1, 1], [], []>} : vector<4x16xbf16>, vector<16x512xbf16>, vector<4x512xf32> -> vector<4x512xf32>
    %c0_3 = arith.constant 0 : index
    %c0_4 = arith.constant 0 : index
    %4 = vector.load %arg4[%c0_3, %c0_4] : memref<4x1xf32, #tpu.memory_space<vmem>>, vector<4x1xf32>
    %5 = vector.broadcast %4 : vector<4x1xf32> to vector<4x512xf32>
    %6 = arith.addf %3, %5 : vector<4x512xf32>
    %cst_5 = arith.constant 0.000000e+00 : f32
    %7 = vector.broadcast %cst_5 : f32 to vector<4x512xf32>
    %8 = arith.maximumf %6, %7 : vector<4x512xf32>
    %c17_i32 = arith.constant 17 : i32
    %9 = tpu.dynamic_rotate %8 by %c17_i32 dim 1 : vector<4x512xf32>, i32 -> vector<4x512xf32>
    %c0_6 = arith.constant 0 : index
    %c0_7 = arith.constant 0 : index
    %10 = vector.load %arg2[%c0_6, %c0_7] : memref<9x512xf32, #tpu.memory_space<vmem>>, vector<1x512xf32>
    %11 = vector.broadcast %10 : vector<1x512xf32> to vector<4x512xf32>
    %12 = arith.mulf %9, %11 : vector<4x512xf32>
    %c0_8 = arith.constant 0 : index
    %c0_9 = arith.constant 0 : index
    %c0_10 = arith.constant 0 : index
    %13 = vector.load %arg5[%c0_8, %c0_9, %c0_10] : memref<9x4x4xbf16, #tpu.memory_space<vmem>>, vector<1x4x4xbf16>
    %14 = vector.shape_cast %13 : vector<1x4x4xbf16> to vector<4x4xbf16>
    %15 = arith.truncf %12 : vector<4x512xf32> to vector<4x512xbf16>
    %cst_11 = arith.constant dense<0.000000e+00> : vector<4x512xf32>
    %16 = tpu.matmul %14, %15, %cst_11 {dimension_numbers = #tpu.dot_dimension_numbers<[1], [0], [0], [1], [0, 0, 1, 1], [], []>} : vector<4x4xbf16>, vector<4x512xbf16>, vector<4x512xf32> -> vector<4x512xf32>
    %c16_i32 = arith.constant 16 : i32
    %17 = tpu.dynamic_rotate %8 by %c16_i32 dim 1 : vector<4x512xf32>, i32 -> vector<4x512xf32>
    %c1 = arith.constant 1 : index
    %c0_12 = arith.constant 0 : index
    %18 = vector.load %arg2[%c1, %c0_12] : memref<9x512xf32, #tpu.memory_space<vmem>>, vector<1x512xf32>
    %19 = vector.broadcast %18 : vector<1x512xf32> to vector<4x512xf32>
    %20 = arith.mulf %17, %19 : vector<4x512xf32>
    %c1_13 = arith.constant 1 : index
    %c0_14 = arith.constant 0 : index
    %c0_15 = arith.constant 0 : index
    %21 = vector.load %arg5[%c1_13, %c0_14, %c0_15] : memref<9x4x4xbf16, #tpu.memory_space<vmem>>, vector<1x4x4xbf16>
    %22 = vector.shape_cast %21 : vector<1x4x4xbf16> to vector<4x4xbf16>
    %23 = arith.truncf %20 : vector<4x512xf32> to vector<4x512xbf16>
    %cst_16 = arith.constant dense<0.000000e+00> : vector<4x512xf32>
    %24 = tpu.matmul %22, %23, %cst_16 {dimension_numbers = #tpu.dot_dimension_numbers<[1], [0], [0], [1], [0, 0, 1, 1], [], []>} : vector<4x4xbf16>, vector<4x512xbf16>, vector<4x512xf32> -> vector<4x512xf32>
    %25 = arith.addf %16, %24 : vector<4x512xf32>
    %c15_i32 = arith.constant 15 : i32
    %26 = tpu.dynamic_rotate %8 by %c15_i32 dim 1 : vector<4x512xf32>, i32 -> vector<4x512xf32>
    %c2 = arith.constant 2 : index
    %c0_17 = arith.constant 0 : index
    %27 = vector.load %arg2[%c2, %c0_17] : memref<9x512xf32, #tpu.memory_space<vmem>>, vector<1x512xf32>
    %28 = vector.broadcast %27 : vector<1x512xf32> to vector<4x512xf32>
    %29 = arith.mulf %26, %28 : vector<4x512xf32>
    %c2_18 = arith.constant 2 : index
    %c0_19 = arith.constant 0 : index
    %c0_20 = arith.constant 0 : index
    %30 = vector.load %arg5[%c2_18, %c0_19, %c0_20] : memref<9x4x4xbf16, #tpu.memory_space<vmem>>, vector<1x4x4xbf16>
    %31 = vector.shape_cast %30 : vector<1x4x4xbf16> to vector<4x4xbf16>
    %32 = arith.truncf %29 : vector<4x512xf32> to vector<4x512xbf16>
    %cst_21 = arith.constant dense<0.000000e+00> : vector<4x512xf32>
    %33 = tpu.matmul %31, %32, %cst_21 {dimension_numbers = #tpu.dot_dimension_numbers<[1], [0], [0], [1], [0, 0, 1, 1], [], []>} : vector<4x4xbf16>, vector<4x512xbf16>, vector<4x512xf32> -> vector<4x512xf32>
    %34 = arith.addf %25, %33 : vector<4x512xf32>
    %c1_i32 = arith.constant 1 : i32
    %35 = tpu.dynamic_rotate %8 by %c1_i32 dim 1 : vector<4x512xf32>, i32 -> vector<4x512xf32>
    %c3 = arith.constant 3 : index
    %c0_22 = arith.constant 0 : index
    %36 = vector.load %arg2[%c3, %c0_22] : memref<9x512xf32, #tpu.memory_space<vmem>>, vector<1x512xf32>
    %37 = vector.broadcast %36 : vector<1x512xf32> to vector<4x512xf32>
    %38 = arith.mulf %35, %37 : vector<4x512xf32>
    %c3_23 = arith.constant 3 : index
    %c0_24 = arith.constant 0 : index
    %c0_25 = arith.constant 0 : index
    %39 = vector.load %arg5[%c3_23, %c0_24, %c0_25] : memref<9x4x4xbf16, #tpu.memory_space<vmem>>, vector<1x4x4xbf16>
    %40 = vector.shape_cast %39 : vector<1x4x4xbf16> to vector<4x4xbf16>
    %41 = arith.truncf %38 : vector<4x512xf32> to vector<4x512xbf16>
    %cst_26 = arith.constant dense<0.000000e+00> : vector<4x512xf32>
    %42 = tpu.matmul %40, %41, %cst_26 {dimension_numbers = #tpu.dot_dimension_numbers<[1], [0], [0], [1], [0, 0, 1, 1], [], []>} : vector<4x4xbf16>, vector<4x512xbf16>, vector<4x512xf32> -> vector<4x512xf32>
    %43 = arith.addf %34, %42 : vector<4x512xf32>
    %c4 = arith.constant 4 : index
    %c0_27 = arith.constant 0 : index
    %c0_28 = arith.constant 0 : index
    %44 = vector.load %arg5[%c4, %c0_27, %c0_28] : memref<9x4x4xbf16, #tpu.memory_space<vmem>>, vector<1x4x4xbf16>
    %45 = vector.shape_cast %44 : vector<1x4x4xbf16> to vector<4x4xbf16>
    %46 = arith.truncf %8 : vector<4x512xf32> to vector<4x512xbf16>
    %cst_29 = arith.constant dense<0.000000e+00> : vector<4x512xf32>
    %47 = tpu.matmul %45, %46, %cst_29 {dimension_numbers = #tpu.dot_dimension_numbers<[1], [0], [0], [1], [0, 0, 1, 1], [], []>} : vector<4x4xbf16>, vector<4x512xbf16>, vector<4x512xf32> -> vector<4x512xf32>
    %48 = arith.addf %43, %47 : vector<4x512xf32>
    %c511_i32 = arith.constant 511 : i32
    %49 = tpu.dynamic_rotate %8 by %c511_i32 dim 1 : vector<4x512xf32>, i32 -> vector<4x512xf32>
    %c5 = arith.constant 5 : index
    %c0_30 = arith.constant 0 : index
    %50 = vector.load %arg2[%c5, %c0_30] : memref<9x512xf32, #tpu.memory_space<vmem>>, vector<1x512xf32>
    %51 = vector.broadcast %50 : vector<1x512xf32> to vector<4x512xf32>
    %52 = arith.mulf %49, %51 : vector<4x512xf32>
    %c5_31 = arith.constant 5 : index
    %c0_32 = arith.constant 0 : index
    %c0_33 = arith.constant 0 : index
    %53 = vector.load %arg5[%c5_31, %c0_32, %c0_33] : memref<9x4x4xbf16, #tpu.memory_space<vmem>>, vector<1x4x4xbf16>
    %54 = vector.shape_cast %53 : vector<1x4x4xbf16> to vector<4x4xbf16>
    %55 = arith.truncf %52 : vector<4x512xf32> to vector<4x512xbf16>
    %cst_34 = arith.constant dense<0.000000e+00> : vector<4x512xf32>
    %56 = tpu.matmul %54, %55, %cst_34 {dimension_numbers = #tpu.dot_dimension_numbers<[1], [0], [0], [1], [0, 0, 1, 1], [], []>} : vector<4x4xbf16>, vector<4x512xbf16>, vector<4x512xf32> -> vector<4x512xf32>
    %57 = arith.addf %48, %56 : vector<4x512xf32>
    %c497_i32 = arith.constant 497 : i32
    %58 = tpu.dynamic_rotate %8 by %c497_i32 dim 1 : vector<4x512xf32>, i32 -> vector<4x512xf32>
    %c6 = arith.constant 6 : index
    %c0_35 = arith.constant 0 : index
    %59 = vector.load %arg2[%c6, %c0_35] : memref<9x512xf32, #tpu.memory_space<vmem>>, vector<1x512xf32>
    %60 = vector.broadcast %59 : vector<1x512xf32> to vector<4x512xf32>
    %61 = arith.mulf %58, %60 : vector<4x512xf32>
    %c6_36 = arith.constant 6 : index
    %c0_37 = arith.constant 0 : index
    %c0_38 = arith.constant 0 : index
    %62 = vector.load %arg5[%c6_36, %c0_37, %c0_38] : memref<9x4x4xbf16, #tpu.memory_space<vmem>>, vector<1x4x4xbf16>
    %63 = vector.shape_cast %62 : vector<1x4x4xbf16> to vector<4x4xbf16>
    %64 = arith.truncf %61 : vector<4x512xf32> to vector<4x512xbf16>
    %cst_39 = arith.constant dense<0.000000e+00> : vector<4x512xf32>
    %65 = tpu.matmul %63, %64, %cst_39 {dimension_numbers = #tpu.dot_dimension_numbers<[1], [0], [0], [1], [0, 0, 1, 1], [], []>} : vector<4x4xbf16>, vector<4x512xbf16>, vector<4x512xf32> -> vector<4x512xf32>
    %66 = arith.addf %57, %65 : vector<4x512xf32>
    %c496_i32 = arith.constant 496 : i32
    %67 = tpu.dynamic_rotate %8 by %c496_i32 dim 1 : vector<4x512xf32>, i32 -> vector<4x512xf32>
    %c7 = arith.constant 7 : index
    %c0_40 = arith.constant 0 : index
    %68 = vector.load %arg2[%c7, %c0_40] : memref<9x512xf32, #tpu.memory_space<vmem>>, vector<1x512xf32>
    %69 = vector.broadcast %68 : vector<1x512xf32> to vector<4x512xf32>
    %70 = arith.mulf %67, %69 : vector<4x512xf32>
    %c7_41 = arith.constant 7 : index
    %c0_42 = arith.constant 0 : index
    %c0_43 = arith.constant 0 : index
    %71 = vector.load %arg5[%c7_41, %c0_42, %c0_43] : memref<9x4x4xbf16, #tpu.memory_space<vmem>>, vector<1x4x4xbf16>
    %72 = vector.shape_cast %71 : vector<1x4x4xbf16> to vector<4x4xbf16>
    %73 = arith.truncf %70 : vector<4x512xf32> to vector<4x512xbf16>
    %cst_44 = arith.constant dense<0.000000e+00> : vector<4x512xf32>
    %74 = tpu.matmul %72, %73, %cst_44 {dimension_numbers = #tpu.dot_dimension_numbers<[1], [0], [0], [1], [0, 0, 1, 1], [], []>} : vector<4x4xbf16>, vector<4x512xbf16>, vector<4x512xf32> -> vector<4x512xf32>
    %75 = arith.addf %66, %74 : vector<4x512xf32>
    %c495_i32 = arith.constant 495 : i32
    %76 = tpu.dynamic_rotate %8 by %c495_i32 dim 1 : vector<4x512xf32>, i32 -> vector<4x512xf32>
    %c8 = arith.constant 8 : index
    %c0_45 = arith.constant 0 : index
    %77 = vector.load %arg2[%c8, %c0_45] : memref<9x512xf32, #tpu.memory_space<vmem>>, vector<1x512xf32>
    %78 = vector.broadcast %77 : vector<1x512xf32> to vector<4x512xf32>
    %79 = arith.mulf %76, %78 : vector<4x512xf32>
    %c8_46 = arith.constant 8 : index
    %c0_47 = arith.constant 0 : index
    %c0_48 = arith.constant 0 : index
    %80 = vector.load %arg5[%c8_46, %c0_47, %c0_48] : memref<9x4x4xbf16, #tpu.memory_space<vmem>>, vector<1x4x4xbf16>
    %81 = vector.shape_cast %80 : vector<1x4x4xbf16> to vector<4x4xbf16>
    %82 = arith.truncf %79 : vector<4x512xf32> to vector<4x512xbf16>
    %cst_49 = arith.constant dense<0.000000e+00> : vector<4x512xf32>
    %83 = tpu.matmul %81, %82, %cst_49 {dimension_numbers = #tpu.dot_dimension_numbers<[1], [0], [0], [1], [0, 0, 1, 1], [], []>} : vector<4x4xbf16>, vector<4x512xbf16>, vector<4x512xf32> -> vector<4x512xf32>
    %84 = arith.addf %75, %83 : vector<4x512xf32>
    %c0_50 = arith.constant 0 : index
    %c0_51 = arith.constant 0 : index
    %85 = vector.load %arg6[%c0_50, %c0_51] : memref<4x1xf32, #tpu.memory_space<vmem>>, vector<4x1xf32>
    %86 = vector.broadcast %85 : vector<4x1xf32> to vector<4x512xf32>
    %87 = arith.addf %84, %86 : vector<4x512xf32>
    %cst_52 = arith.constant 0.000000e+00 : f32
    %88 = vector.broadcast %cst_52 : f32 to vector<4x512xf32>
    %89 = arith.maximumf %87, %88 : vector<4x512xf32>
    %c0_53 = arith.constant 0 : index
    %c0_54 = arith.constant 0 : index
    %90 = vector.load %arg7[%c0_53, %c0_54] : memref<16x4xbf16, #tpu.memory_space<vmem>>, vector<16x4xbf16>
    %91 = arith.truncf %89 : vector<4x512xf32> to vector<4x512xbf16>
    %cst_55 = arith.constant dense<0.000000e+00> : vector<16x512xf32>
    %92 = tpu.matmul %90, %91, %cst_55 {dimension_numbers = #tpu.dot_dimension_numbers<[1], [0], [0], [1], [0, 0, 1, 1], [], []>} : vector<16x4xbf16>, vector<4x512xbf16>, vector<16x512xf32> -> vector<16x512xf32>
    %c0_56 = arith.constant 0 : index
    %c0_57 = arith.constant 0 : index
    %93 = vector.load %arg8[%c0_56, %c0_57] : memref<16x1xf32, #tpu.memory_space<vmem>>, vector<16x1xf32>
    %94 = vector.broadcast %93 : vector<16x1xf32> to vector<16x512xf32>
    %95 = arith.addf %92, %94 : vector<16x512xf32>
    %96 = arith.addf %95, %0 : vector<16x512xf32>
    %cst_58 = arith.constant 0.000000e+00 : f32
    %97 = vector.broadcast %cst_58 : f32 to vector<16x512xf32>
    %98 = arith.maximumf %96, %97 : vector<16x512xf32>
    %c0_59 = arith.constant 0 : index
    %c0_60 = arith.constant 0 : index
    %99 = vector.load %arg9[%c0_59, %c0_60] : memref<16x512xf32, #tpu.memory_space<vmem>>, vector<16x512xf32>
    tpu.vector_store %arg9[%c0_59, %c0_60], %98 {strides = array<i32>} : memref<16x512xf32, #tpu.memory_space<vmem>>, vector<16x512xf32>,
    return
  }
  func.func @transform_0(%arg0: i32) -> (i32, i32) {
    %c0_i32 = arith.constant 0 : i32
    %c0_i32_0 = arith.constant 0 : i32
    return %c0_i32, %arg0 : i32, i32
  }
  func.func @transform_1(%arg0: i32) -> (i32, i32) {
    %c0_i32 = arith.constant 0 : i32
    %c0_i32_0 = arith.constant 0 : i32
    %c0_i32_1 = arith.constant 0 : i32
    return %c0_i32, %c0_i32_0 : i32, i32
  }
  func.func @transform_2(%arg0: i32) -> (i32, i32) {
    %c0_i32 = arith.constant 0 : i32
    %c0_i32_0 = arith.constant 0 : i32
    %c0_i32_1 = arith.constant 0 : i32
    return %c0_i32, %c0_i32_0 : i32, i32
  }
  func.func @transform_3(%arg0: i32) -> (i32, i32) {
    %c0_i32 = arith.constant 0 : i32
    %c0_i32_0 = arith.constant 0 : i32
    %c0_i32_1 = arith.constant 0 : i32
    return %c0_i32, %c0_i32_0 : i32, i32
  }
  func.func @transform_4(%arg0: i32) -> (i32, i32, i32) {
    %c0_i32 = arith.constant 0 : i32
    %c0_i32_0 = arith.constant 0 : i32
    %c0_i32_1 = arith.constant 0 : i32
    %c0_i32_2 = arith.constant 0 : i32
    return %c0_i32, %c0_i32_0, %c0_i32_1 : i32, i32, i32
  }
  func.func @transform_5(%arg0: i32) -> (i32, i32) {
    %c0_i32 = arith.constant 0 : i32
    %c0_i32_0 = arith.constant 0 : i32
    %c0_i32_1 = arith.constant 0 : i32
    return %c0_i32, %c0_i32_0 : i32, i32
  }
  func.func @transform_6(%arg0: i32) -> (i32, i32) {
    %c0_i32 = arith.constant 0 : i32
    %c0_i32_0 = arith.constant 0 : i32
    %c0_i32_1 = arith.constant 0 : i32
    return %c0_i32, %c0_i32_0 : i32, i32
  }
  func.func @transform_7(%arg0: i32) -> (i32, i32) {
    %c0_i32 = arith.constant 0 : i32
    %c0_i32_0 = arith.constant 0 : i32
    %c0_i32_1 = arith.constant 0 : i32
    return %c0_i32, %c0_i32_0 : i32, i32
  }
  func.func @transform_8(%arg0: i32) -> (i32, i32) {
    %c0_i32 = arith.constant 0 : i32
    %c0_i32_0 = arith.constant 0 : i32
    return %c0_i32, %arg0 : i32, i32
  }
}

</mosaic_0001>

<llo_original>
// kernel: tpu_custom_call.1
$region0: #{tpu_custom_call.1}
  #allocation0 [shape = 'u32[]', space=smem, size = 0x4, offset = 0x4, fixed_abs, tag = 'smem constant byte address 0x4 - core index']
  #allocation1 [shape = 'u32[72,128]{1,0:T(1,128)}', space=vmem, size = 0x9000, scoped, tag = 'internal scratch']
  %s0 = inlined_call_operand.hbm [shape: f32[16,1024], index: 0, kind: input, shape index: {}]
  %s1 = inlined_call_operand.hbm [shape: f32[9,512], index: 1, kind: input, shape index: {}]
  %s2 = inlined_call_operand.vmem [shape: bf16[4,16], index: 2, kind: input, shape index: {}]
  %s3 = inlined_call_operand.vmem [shape: f32[4,1], index: 3, kind: input, shape index: {}]
  %s4 = inlined_call_operand.vmem [shape: bf16[9,4,4], index: 4, kind: input, shape index: {}]
  %s5 = inlined_call_operand.vmem [shape: f32[4,1], index: 5, kind: input, shape index: {}]
  %s6 = inlined_call_operand.vmem [shape: bf16[16,4], index: 6, kind: input, shape index: {}]
  %s7 = inlined_call_operand.vmem [shape: f32[16,1], index: 7, kind: input, shape index: {}]
  %s8 = inlined_call_operand.hbm [shape: f32[16,1024], index: 8, kind: output, shape index: {}]
  %s9 = sld [smem:[#allocation0]]
  $region73: #{tpu_custom_call.1} parent=0
    _
  %s11 = ssub.s32 1, %s9
  %s12 = scalar_select 0, %s11, %s9
  $region1: #{tpu_custom_call.1} parent=0
    #allocation2 [shape = 'u8[65536]{0}', space=vmem, size = 0x10000, scoped, tag = 'input window, operand 0']
    #allocation3 [shape = 's32[2]{0}', space=sflag, size = 0x8, scoped, tag = 'scoped memory for tpu_custom_call.1']
    #allocation4 [shape = 's32[2]{0}', space=sflag, size = 0x8, scoped, tag = 'scoped memory for tpu_custom_call.1']
    #allocation5 [shape = 'u8[32768]{0}', space=vmem, size = 0x8000, scoped, tag = 'input window, operand 1, single buffered']
    #allocation6 [shape = 's32[1]{0}', space=sflag, size = 0x4, scoped, tag = 'scoped memory for tpu_custom_call.1']
    #allocation7 [shape = 'u8[65536]{0}', space=vmem, size = 0x10000, scoped, tag = 'output window, operand 0']
    %13 = vsyncpa [#allocation3], 0
    %s14 = scalar_lea.sflag [#allocation3], 1
    %15 = vsyncpa %s14, 0
    %16 = vsyncpa [#allocation6], 0
    %17 = vsyncpa [#allocation4], 0
    %s18 = scalar_lea.sflag [#allocation4], 1
    %19 = vsyncpa %s18, 0
    loop: start=0, step=1, limit=4
    $region2: #{tpu_custom_call.1} parent=1 // loop_pre_header
      _
    $region3: #{tpu_custom_call.1} parent=1 // loop_header
      %s21 = sphi 0, %s25
      %p22 = scmp.ge.s32.totalorder %s21, 4
      %s31 = sphi 0, %s33
      %s34 = sphi 0, %s31
      %s35 = sphi 0, %s34
      %s51 = sphi 0, %s35
      %s55 = sphi 0, %s55
      %s57 = sphi 0, %s55
      %s58 = sphi 0, %s57
      %s72 = sphi 0, %s58
      %s76 = sphi 0, %s76
      %s78 = sphi 0, %s76
      %s79 = sphi 0, %s78
      %s93 = sphi 0, %s79
      %s97 = sphi 0, %s97
      %s99 = sphi 0, %s97
      %s100 = sphi 0, %s99
      %s114 = sphi 0, %s100
      %s118 = sphi 0, %s118
      %s120 = sphi 0, %s118
      %s121 = sphi 0, %s120
      %s135 = sphi 0, %s121
      %s139 = sphi 0, %s139
      %s141 = sphi 0, %s139
      %s142 = sphi 0, %s141
      %s156 = sphi 0, %s142
      %s160 = sphi 0, %s160
      %s162 = sphi 0, %s160
      %s163 = sphi 0, %s162
      %s177 = sphi 0, %s163
      %s181 = sphi 0, %s181
      %s183 = sphi 0, %s181
      %s184 = sphi 0, %s183
      %s198 = sphi 0, %s184
      %s204 = sphi 0, %s206
      %s207 = sphi 0, %s204
      %s208 = sphi 0, %s207
      %s224 = sphi 0, %s208
    $region4: #{tpu_custom_call.1} parent=1 // loop_header_branch
      %24 = sbr.rel (%p22) target = $region8
    $region5: #{tpu_custom_call.1} parent=1 // loop_body
      %s26 = ssub.s32 %s21, 1
      %s27 = ssub.s32 %s21, 2
      %s28 = sadd.s32 %s21, 1
      %s29 = ssub.s32 %s21, %s28
      %p30 = scmp.eq.s32.totalorder %s29, 0
      %s32 = sadd.s32 %s31, 1
      %s33 = scalar_select %p30, %s31, %s32
      %p36 = pneg %p30
      %p37 = scmp.eq.s32.totalorder %s21, 1
      %p38 = por %p36, %p37
      %p39 = scmp.ne.s32.totalorder %s31, %s34
      %p40 = scmp.eq.s32.totalorder %s21, 0
      %p41 = por %p39, %p40
      %p42 = scmp.ne.s32.totalorder %s31, %s34
      %p43 = scmp.eq.s32.totalorder %s26, 1
      %p44 = por %p42, %p43
      %p45 = scmp.ne.s32.totalorder %s34, %s35
      %p46 = scmp.eq.s32.totalorder %s26, 0
      %p47 = por %p45, %p46
      %p48 = scmp.ne.s32.totalorder %s34, %s35
      %p49 = scmp.eq.s32.totalorder %s27, 1
      %p50 = por %p48, %p49
      %p52 = scmp.ne.s32.totalorder %s35, %s51
      %p53 = scmp.eq.s32.totalorder %s27, 0
      %p54 = por %p52, %p53
      %s56 = sadd.s32 %s55, 1
      %p59 = scmp.eq.s32.totalorder %s21, 1
      %p60 = scmp.ne.s32.totalorder %s55, %s57
      %p61 = scmp.eq.s32.totalorder %s21, 0
      %p62 = por %p60, %p61
      %p63 = scmp.ne.s32.totalorder %s55, %s57
      %p64 = scmp.eq.s32.totalorder %s26, 1
      %p65 = por %p63, %p64
      %p66 = scmp.ne.s32.totalorder %s57, %s58
      %p67 = scmp.eq.s32.totalorder %s26, 0
      %p68 = por %p66, %p67
      %p69 = scmp.ne.s32.totalorder %s57, %s58
      %p70 = scmp.eq.s32.totalorder %s27, 1
      %p71 = por %p69, %p70
      %p73 = scmp.ne.s32.totalorder %s58, %s72
      %p74 = scmp.eq.s32.totalorder %s27, 0
      %p75 = por %p73, %p74
      %s77 = sadd.s32 %s76, 1
      %p80 = scmp.eq.s32.totalorder %s21, 1
      %p81 = scmp.ne.s32.totalorder %s76, %s78
      %p82 = scmp.eq.s32.totalorder %s21, 0
      %p83 = por %p81, %p82
      %p84 = scmp.ne.s32.totalorder %s76, %s78
      %p85 = scmp.eq.s32.totalorder %s26, 1
      %p86 = por %p84, %p85
      %p87 = scmp.ne.s32.totalorder %s78, %s79
      %p88 = scmp.eq.s32.totalorder %s26, 0
      %p89 = por %p87, %p88
      %p90 = scmp.ne.s32.totalorder %s78, %s79
      %p91 = scmp.eq.s32.totalorder %s27, 1
      %p92 = por %p90, %p91
      %p94 = scmp.ne.s32.totalorder %s79, %s93
      %p95 = scmp.eq.s32.totalorder %s27, 0
      %p96 = por %p94, %p95
      %s98 = sadd.s32 %s97, 1
      %p101 = scmp.eq.s32.totalorder %s21, 1
      %p102 = scmp.ne.s32.totalorder %s97, %s99
      %p103 = scmp.eq.s32.totalorder %s21, 0
      %p104 = por %p102, %p103
      %p105 = scmp.ne.s32.totalorder %s97, %s99
      %p106 = scmp.eq.s32.totalorder %s26, 1
      %p107 = por %p105, %p106
      %p108 = scmp.ne.s32.totalorder %s99, %s100
      %p109 = scmp.eq.s32.totalorder %s26, 0
      %p110 = por %p108, %p109
      %p111 = scmp.ne.s32.totalorder %s99, %s100
      %p112 = scmp.eq.s32.totalorder %s27, 1
      %p113 = por %p111, %p112
      %p115 = scmp.ne.s32.totalorder %s100, %s114
      %p116 = scmp.eq.s32.totalorder %s27, 0
      %p117 = por %p115, %p116
      %s119 = sadd.s32 %s118, 1
      %p122 = scmp.eq.s32.totalorder %s21, 1
      %p123 = scmp.ne.s32.totalorder %s118, %s120
      %p124 = scmp.eq.s32.totalorder %s21, 0
      %p125 = por %p123, %p124
      %p126 = scmp.ne.s32.totalorder %s118, %s120
      %p127 = scmp.eq.s32.totalorder %s26, 1
      %p128 = por %p126, %p127
      %p129 = scmp.ne.s32.totalorder %s120, %s121
      %p130 = scmp.eq.s32.totalorder %s26, 0
      %p131 = por %p129, %p130
      %p132 = scmp.ne.s32.totalorder %s120, %s121
      %p133 = scmp.eq.s32.totalorder %s27, 1
      %p134 = por %p132, %p133
      %p136 = scmp.ne.s32.totalorder %s121, %s135
      %p137 = scmp.eq.s32.totalorder %s27, 0
      %p138 = por %p136, %p137
      %s140 = sadd.s32 %s139, 1
      %p143 = scmp.eq.s32.totalorder %s21, 1
      %p144 = scmp.ne.s32.totalorder %s139, %s141
      %p145 = scmp.eq.s32.totalorder %s21, 0
      %p146 = por %p144, %p145
      %p147 = scmp.ne.s32.totalorder %s139, %s141
      %p148 = scmp.eq.s32.totalorder %s26, 1
      %p149 = por %p147, %p148
      %p150 = scmp.ne.s32.totalorder %s141, %s142
      %p151 = scmp.eq.s32.totalorder %s26, 0
      %p152 = por %p150, %p151
      %p153 = scmp.ne.s32.totalorder %s141, %s142
      %p154 = scmp.eq.s32.totalorder %s27, 1
      %p155 = por %p153, %p154
      %p157 = scmp.ne.s32.totalorder %s142, %s156
      %p158 = scmp.eq.s32.totalorder %s27, 0
      %p159 = por %p157, %p158
      %s161 = sadd.s32 %s160, 1
      %p164 = scmp.eq.s32.totalorder %s21, 1
      %p165 = scmp.ne.s32.totalorder %s160, %s162
      %p166 = scmp.eq.s32.totalorder %s21, 0
      %p167 = por %p165, %p166
      %p168 = scmp.ne.s32.totalorder %s160, %s162
      %p169 = scmp.eq.s32.totalorder %s26, 1
      %p170 = por %p168, %p169
      %p171 = scmp.ne.s32.totalorder %s162, %s163
      %p172 = scmp.eq.s32.totalorder %s26, 0
      %p173 = por %p171, %p172
      %p174 = scmp.ne.s32.totalorder %s162, %s163
      %p175 = scmp.eq.s32.totalorder %s27, 1
      %p176 = por %p174, %p175
      %p178 = scmp.ne.s32.totalorder %s163, %s177
      %p179 = scmp.eq.s32.totalorder %s27, 0
      %p180 = por %p178, %p179
      %s182 = sadd.s32 %s181, 1
      %p185 = scmp.eq.s32.totalorder %s21, 1
      %p186 = scmp.ne.s32.totalorder %s181, %s183
      %p187 = scmp.eq.s32.totalorder %s21, 0
      %p188 = por %p186, %p187
      %p189 = scmp.ne.s32.totalorder %s181, %s183
      %p190 = scmp.eq.s32.totalorder %s26, 1
      %p191 = por %p189, %p190
      %p192 = scmp.ne.s32.totalorder %s183, %s184
      %p193 = scmp.eq.s32.totalorder %s26, 0
      %p194 = por %p192, %p193
      %p195 = scmp.ne.s32.totalorder %s183, %s184
      %p196 = scmp.eq.s32.totalorder %s27, 1
      %p197 = por %p195, %p196
      %p199 = scmp.ne.s32.totalorder %s184, %s198
      %p200 = scmp.eq.s32.totalorder %s27, 0
      %p201 = por %p199, %p200
      %s202 = ssub.s32 %s21, %s28
      %p203 = scmp.eq.s32.totalorder %s202, 0
      %s205 = sadd.s32 %s204, 1
      %s206 = scalar_select %p203, %s204, %s205
      %p209 = pneg %p203
      %p210 = scmp.eq.s32.totalorder %s21, 1
      %p211 = por %p209, %p210
      %p212 = scmp.ne.s32.totalorder %s204, %s207
      %p213 = scmp.eq.s32.totalorder %s21, 0
      %p214 = por %p212, %p213
      %p215 = scmp.ne.s32.totalorder %s204, %s207
      %p216 = scmp.eq.s32.totalorder %s26, 1
      %p217 = por %p215, %p216
      %p218 = scmp.ne.s32.totalorder %s207, %s208
      %p219 = scmp.eq.s32.totalorder %s26, 0
      %p220 = por %p218, %p219
      %p221 = scmp.ne.s32.totalorder %s207, %s208
      %p222 = scmp.eq.s32.totalorder %s27, 1
      %p223 = por %p221, %p222
      %p225 = scmp.ne.s32.totalorder %s208, %s224
      %p226 = scmp.eq.s32.totalorder %s27, 0
      %p227 = por %p225, %p226
      %p228 = scmp.le.s32.totalorder 1, %s21
      %p229 = scmp.lt.s32.totalorder %s21, 3
      %p230 = pnand %p228, %p229
      %p231 = pneg %p230
      // Predicated region
      $region9: #{tpu_custom_call.1} parent=5 // pred_check
        _
      $region10: #{tpu_custom_call.1} parent=5 // pred_check_branch
        %233 = sbr.rel (%p230) target = $region12
      $region11: #{tpu_custom_call.1} parent=5 // pred_region
        %s234 = ssub.s32 %s21, 1
        // Predicated region
        $region13: #{tpu_custom_call.1} parent=11 // pred_check
          %p235 = pneg %p68
        $region14: #{tpu_custom_call.1} parent=11 // pred_check_branch
          %237 = sbr.rel (%p235) target = $region16
        $region15: #{tpu_custom_call.1} parent=11 // pred_region
          %239 = vsyncadd [#allocation6], 0
          %s240 = sshll.u32 %s1, 4
          %s241 = int_to_ptr.hbm [resolvable:$true] %s240
          %s242 = sshll.u32 [#allocation5], 4
          %s243 = int_to_ptr.vmem [resolvable:$true] %s242
          %248 = dma.hbm_to_vmem [thread:$0]  %s241, 1024, %s243, [#allocation6], 512, 512, 32
        $region16: #{tpu_custom_call.1} parent=11 // pred_fallthru
          _
        // Predicated region
        $region17: #{tpu_custom_call.1} parent=11 // pred_check
          %p249 = pneg %p89
        $region18: #{tpu_custom_call.1} parent=11 // pred_check_branch
          %251 = sbr.rel (%p249) target = $region20
        $region19: #{tpu_custom_call.1} parent=11 // pred_region
          _
        $region20: #{tpu_custom_call.1} parent=11 // pred_fallthru
          _
        // Predicated region
        $region21: #{tpu_custom_call.1} parent=11 // pred_check
          %p252 = pneg %p110
        $region22: #{tpu_custom_call.1} parent=11 // pred_check_branch
          %254 = sbr.rel (%p252) target = $region24
        $region23: #{tpu_custom_call.1} parent=11 // pred_region
          _
        $region24: #{tpu_custom_call.1} parent=11 // pred_fallthru
          _
        // Predicated region
        $region25: #{tpu_custom_call.1} parent=11 // pred_check
          %p255 = pneg %p131
        $region26: #{tpu_custom_call.1} parent=11 // pred_check_branch
          %257 = sbr.rel (%p255) target = $region28
        $region27: #{tpu_custom_call.1} parent=11 // pred_region
          _
        $region28: #{tpu_custom_call.1} parent=11 // pred_fallthru
          _
        // Predicated region
        $region29: #{tpu_custom_call.1} parent=11 // pred_check
          %p258 = pneg %p152
        $region30: #{tpu_custom_call.1} parent=11 // pred_check_branch
          %260 = sbr.rel (%p258) target = $region32
        $region31: #{tpu_custom_call.1} parent=11 // pred_region
          _
        $region32: #{tpu_custom_call.1} parent=11 // pred_fallthru
          _
        // Predicated region
        $region33: #{tpu_custom_call.1} parent=11 // pred_check
          %p261 = pneg %p173
        $region34: #{tpu_custom_call.1} parent=11 // pred_check_branch
          %263 = sbr.rel (%p261) target = $region36
        $region35: #{tpu_custom_call.1} parent=11 // pred_region
          _
        $region36: #{tpu_custom_call.1} parent=11 // pred_fallthru
          _
        // Predicated region
        $region37: #{tpu_custom_call.1} parent=11 // pred_check
          %p264 = pneg %p194
        $region38: #{tpu_custom_call.1} parent=11 // pred_check_branch
          %266 = sbr.rel (%p264) target = $region40
        $region39: #{tpu_custom_call.1} parent=11 // pred_region
          _
        $region40: #{tpu_custom_call.1} parent=11 // pred_fallthru
          _
      $region12: #{tpu_custom_call.1} parent=5 // pred_fallthru
        _
      %p267 = scmp.lt.s32.totalorder %s21, 2
      // Predicated region
      $region41: #{tpu_custom_call.1} parent=5 // pred_check
        %p268 = pneg %p267
      $region42: #{tpu_custom_call.1} parent=5 // pred_check_branch
        %270 = sbr.rel (%p268) target = $region44
      $region43: #{tpu_custom_call.1} parent=5 // pred_region
        // Predicated region
        $region45: #{tpu_custom_call.1} parent=43 // pred_check
          %p271 = pneg %p41
        $region46: #{tpu_custom_call.1} parent=43 // pred_check_branch
          %273 = sbr.rel (%p271) target = $region48
        $region47: #{tpu_custom_call.1} parent=43 // pred_region
          %s274 = sand.u32 %s31, 1
          %s275 = scalar_lea.sflag [#allocation3], %s274
          %s276 = sand.u32 %s31, 1
          %s277 = smul.addr %s276, 64
          %s278 = scalar_lea.vmem [#allocation2], %s277
          %s279 = smul.u32 4, %s21
          %281 = vsyncadd %s275, 0
          %s282 = smul.addr %s279, 8
          %s283 = scalar_lea.hbm %s0, %s282
          %s284 = sshll.u32 %s283, 4
          %s285 = int_to_ptr.hbm [resolvable:$true] %s284
          %s286 = sshll.u32 %s278, 4
          %s287 = int_to_ptr.vmem [resolvable:$true] %s286
          %292 = dma.hbm_to_vmem [thread:$0]  %s285, 1024, %s287, %s275, 1024, 512, 32
        $region48: #{tpu_custom_call.1} parent=43 // pred_fallthru
          _
      $region44: #{tpu_custom_call.1} parent=5 // pred_fallthru
        _
      %p293 = scmp.le.s32.totalorder 1, %s21
      %p294 = scmp.lt.s32.totalorder %s21, 3
      %p295 = pnand %p293, %p294
      %p296 = pneg %p295
      // Predicated region
      $region49: #{tpu_custom_call.1} parent=5 // pred_check
        _
      $region50: #{tpu_custom_call.1} parent=5 // pred_check_branch
        %298 = sbr.rel (%p295) target = $region52
      $region51: #{tpu_custom_call.1} parent=5 // pred_region
        %s299 = ssub.s32 %s21, 1
        %s300 = sand.u32 %s34, 1
        %s301 = scalar_lea.sflag [#allocation3], %s300
        %s302 = sand.u32 %s34, 1
        %s303 = smul.addr %s302, 64
        %s304 = scalar_lea.vmem [#allocation2], %s303
        // Predicated region
        $region53: #{tpu_custom_call.1} parent=51 // pred_check
          %p305 = pneg %p47
        $region54: #{tpu_custom_call.1} parent=51 // pred_check_branch
          %307 = sbr.rel (%p305) target = $region56
        $region55: #{tpu_custom_call.1} parent=51 // pred_region
          %309 = dma.done %s301, 1024
        $region56: #{tpu_custom_call.1} parent=51 // pred_fallthru
          _
        // Predicated region
        $region57: #{tpu_custom_call.1} parent=51 // pred_check
          %p310 = pneg %p68
        $region58: #{tpu_custom_call.1} parent=51 // pred_check_branch
          %312 = sbr.rel (%p310) target = $region60
        $region59: #{tpu_custom_call.1} parent=51 // pred_region
          %314 = dma.done [#allocation6], 1024
        $region60: #{tpu_custom_call.1} parent=51 // pred_fallthru
          _
        %s315 = sand.u32 %s34, 1
        %s316 = scalar_lea.sflag [#allocation3], %s315
        %s317 = sand.u32 %s34, 1
        %s318 = smul.addr %s317, 64
        %s319 = scalar_lea.vmem [#allocation2], %s318
        %p320 = pneg %p47
        %p321 = pneg %p44
        %p322 = pneg %p68
        %p323 = pneg %p65
        %p324 = pneg %p89
        %p325 = pneg %p86
        %p326 = pneg %p110
        %p327 = pneg %p107
        %p328 = pneg %p131
        %p329 = pneg %p128
        %p330 = pneg %p152
        %p331 = pneg %p149
        %p332 = pneg %p173
        %p333 = pneg %p170
        %p334 = pneg %p194
        %p335 = pneg %p191
        %p336 = pneg %p220
        %p337 = pneg %p217
        %s338 = sand.u32 %s207, 1
        %s339 = scalar_lea.sflag [#allocation4], %s338
        %s340 = sand.u32 %s207, 1
        %s341 = smul.addr %s340, 64
        %s342 = scalar_lea.vmem [#allocation7], %s341
        %s343 = smul.u32 4, %s26
        %s344 = smul.u32 4, %s26
        %v346 = vld [vmem:[%s304] sm:$0xff]
        %v347 = vld [vmem:[%s304 + $0x8] sm:$0xff]
        %v348 = vld [vmem:[%s304 + $0x10] sm:$0xff]
        %v349 = vld [vmem:[%s304 + $0x18] sm:$0xff]
        %v350 = vld [vmem:[%s304 + $0x20] sm:$0xff]
        %v351 = vld [vmem:[%s304 + $0x28] sm:$0xff]
        %v352 = vld [vmem:[%s304 + $0x30] sm:$0xff]
        %v353 = vld [vmem:[%s304 + $0x38] sm:$0xff]
        %v354 = vld [vmem:[%s2] sm:$0x3]
        %v355 = vpack.c.bf16 %v350, %v346
        %v356 = vpack.c.bf16 %v351, %v347
        %v357 = vpack.c.bf16 %v352, %v348
        %v358 = vpack.c.bf16 %v353, %v349
        %v359 = vld [vmem:[%s3] sm:$0xf]
        %361 = vset.pattern.permute.xlu0 0
        %362 = vperm.xlu0 %361, %v359
        %v363 = vpop.permute.xlu0 %362
        %vm365 = vcmask 130048
        %v367 = vsel %vm365, %v354, 0
        %369 = vmatpush.bf16.msra.mxu0 0
        %370 = vmatpush.bf16.msra.mxu0 0
        %371 = vmatpush.bf16.msra.mxu0 0
        %372 = vmatpush.bf16.msra.mxu0 0
        %373 = vmatpush.bf16.msra.mxu0 0
        %374 = vmatpush.bf16.msra.mxu0 0
        %375 = vmatpush.bf16.msra.mxu0 0
        %376 = vmatpush.bf16.msra.mxu0 %v355
        %377 = vmatmul.bf16.gmra.mxu0 %v367
        %v378 = vpop.f32.mrf.mxu0
        %v379 = vadd.f32 %v363, %v378
        %v380 = vpop.f32.mrf.mxu0
        %381 = vdwg.mxu0
        %382 = vmatpush.bf16.msra.mxu0 0
        %383 = vmatpush.bf16.msra.mxu0 0
        %384 = vmatpush.bf16.msra.mxu0 0
        %385 = vmatpush.bf16.msra.mxu0 0
        %386 = vmatpush.bf16.msra.mxu0 0
        %387 = vmatpush.bf16.msra.mxu0 0
        %388 = vmatpush.bf16.msra.mxu0 0
        %389 = vmatpush.bf16.msra.mxu0 %v356
        %390 = vmatmul.bf16.gmra.mxu0 %v367
        %v391 = vpop.f32.mrf.mxu0
        %v392 = vadd.f32 %v363, %v391
        %v393 = vpop.f32.mrf.mxu0
        %394 = vdwg.mxu0
        %395 = vmatpush.bf16.msra.mxu0 0
        %396 = vmatpush.bf16.msra.mxu0 0
        %397 = vmatpush.bf16.msra.mxu0 0
        %398 = vmatpush.bf16.msra.mxu0 0
        %399 = vmatpush.bf16.msra.mxu0 0
        %400 = vmatpush.bf16.msra.mxu0 0
        %401 = vmatpush.bf16.msra.mxu0 0
        %402 = vmatpush.bf16.msra.mxu0 %v357
        %403 = vmatmul.bf16.gmra.mxu0 %v367
        %v404 = vpop.f32.mrf.mxu0
        %v405 = vadd.f32 %v363, %v404
        %v406 = vpop.f32.mrf.mxu0
        %407 = vdwg.mxu0
        %408 = vmatpush.bf16.msra.mxu0 0
        %409 = vmatpush.bf16.msra.mxu0 0
        %410 = vmatpush.bf16.msra.mxu0 0
        %411 = vmatpush.bf16.msra.mxu0 0
        %412 = vmatpush.bf16.msra.mxu0 0
        %413 = vmatpush.bf16.msra.mxu0 0
        %414 = vmatpush.bf16.msra.mxu0 0
        %415 = vmatpush.bf16.msra.mxu0 %v358
        %416 = vmatmul.bf16.gmra.mxu0 %v367
        %v417 = vpop.f32.mrf.mxu0
        %v418 = vadd.f32 %v363, %v417
        %v419 = vpop.f32.mrf.mxu0
        %420 = vdwg.mxu0
        %v421 = vmax.f32 %v379, 0.0
        %v422 = vmax.f32 %v392, 0.0
        %v423 = vmax.f32 %v405, 0.0
        %v424 = vmax.f32 %v418, 0.0
        %425 = vrot.lane.b32.xlu0 %v421, 17
        %v426 = vpop.permute.xlu0 %425
        %427 = vrot.lane.b32.xlu0 %v422, 17
        %v428 = vpop.permute.xlu0 %427
        %429 = vrot.lane.b32.xlu0 %v423, 17
        %v430 = vpop.permute.xlu0 %429
        %431 = vrot.lane.b32.xlu0 %v424, 17
        %v432 = vpop.permute.xlu0 %431
        %v433 = vlaneseq
        %v434 = vand.u32 %v433, 127
        %vm435 = vcmp.lt.s32.totalorder %v434, 17
        %v436 = vsel %vm435, %v430, %v432
        %v437 = vsel %vm435, %v428, %v430
        %v438 = vsel %vm435, %v426, %v428
        %v439 = vsel %vm435, %v432, %v426
        %v440 = vld [vmem:[#allocation5] ss:$8 sm:$0xf]
        %v442 = vperm.slane %v440, 0
        %v443 = vperm.slane %v440, 1
        %v444 = vperm.slane %v440, 2
        %v445 = vperm.slane %v440, 3
        %v450 = vmul.f32 %v439, %v442
        %v451 = vmul.f32 %v438, %v443
        %v452 = vmul.f32 %v437, %v444
        %v453 = vmul.f32 %v436, %v445
        %v454 = vld [vmem:[%s4] sm:$0x3]
        %v455 = vpack.c.bf16 %v450, %v450
        %v456 = vpack.c.bf16 %v451, %v451
        %v457 = vpack.c.bf16 %v452, %v452
        %v458 = vpack.c.bf16 %v453, %v453
        %459 = vrot.lane.b32.xlu0 %v421, 16
        %v460 = vpop.permute.xlu0 %459
        %461 = vrot.lane.b32.xlu0 %v422, 16
        %v462 = vpop.permute.xlu0 %461
        %463 = vrot.lane.b32.xlu0 %v423, 16
        %v464 = vpop.permute.xlu0 %463
        %465 = vrot.lane.b32.xlu0 %v424, 16
        %v466 = vpop.permute.xlu0 %465
        %vm467 = vcmp.lt.s32.totalorder %v434, 16
        %v468 = vsel %vm467, %v464, %v466
        %v469 = vsel %vm467, %v462, %v464
        %v470 = vsel %vm467, %v460, %v462
        %v471 = vsel %vm467, %v466, %v460
        %s472 = scalar_lea.vmem [#allocation5], 1
        %v473 = vld [vmem:[%s472] ss:$8 sm:$0xf]
        %v475 = vperm.slane %v473, 0
        %v476 = vperm.slane %v473, 1
        %v477 = vperm.slane %v473, 2
        %v478 = vperm.slane %v473, 3
        %v483 = vmul.f32 %v471, %v475
        %v484 = vmul.f32 %v470, %v476
        %v485 = vmul.f32 %v469, %v477
        %v486 = vmul.f32 %v468, %v478
        %s487 = scalar_lea.vmem %s4, 2
        %v488 = vld [vmem:[%s487] sm:$0x3]
        %v489 = vpack.c.bf16 %v483, %v483
        %v490 = vpack.c.bf16 %v484, %v484
        %v491 = vpack.c.bf16 %v485, %v485
        %v492 = vpack.c.bf16 %v486, %v486
        %vm493 = vcmask 31744
        %v495 = vsel %vm493, %v488, 0
        %vm497 = vcmask 1041408
        %v499 = vsel %vm497, %v489, 0
        %v502 = vsel %vm497, %v490, 0
        %v505 = vsel %vm497, %v491, 0
        %v508 = vsel %vm497, %v492, 0
        %510 = vmatpush.bf16.msra.mxu0 0
        %511 = vmatpush.bf16.msra.mxu0 0
        %512 = vmatpush.bf16.msra.mxu0 0
        %513 = vmatpush.bf16.msra.mxu0 0
        %514 = vmatpush.bf16.msra.mxu0 0
        %515 = vmatpush.bf16.msra.mxu0 0
        %516 = vmatpush.bf16.msra.mxu0 0
        %517 = vmatpush.bf16.msra.mxu0 %v499
        %518 = vmatmul.bf16.gmra.mxu0 %v495
        %v519 = vpop.f32.mrf.mxu0
        %v520 = vadd.f32 0.0, %v519
        %v521 = vpop.f32.mrf.mxu0
        %522 = vdwg.mxu0
        %523 = vmatpush.bf16.msra.mxu0 0
        %524 = vmatpush.bf16.msra.mxu0 0
        %525 = vmatpush.bf16.msra.mxu0 0
        %526 = vmatpush.bf16.msra.mxu0 0
        %527 = vmatpush.bf16.msra.mxu0 0
        %528 = vmatpush.bf16.msra.mxu0 0
        %529 = vmatpush.bf16.msra.mxu0 0
        %530 = vmatpush.bf16.msra.mxu0 %v502
        %531 = vmatmul.bf16.gmra.mxu0 %v495
        %v532 = vpop.f32.mrf.mxu0
        %v533 = vadd.f32 0.0, %v532
        %v534 = vpop.f32.mrf.mxu0
        %535 = vdwg.mxu0
        %536 = vmatpush.bf16.msra.mxu0 0
        %537 = vmatpush.bf16.msra.mxu0 0
        %538 = vmatpush.bf16.msra.mxu0 0
        %539 = vmatpush.bf16.msra.mxu0 0
        %540 = vmatpush.bf16.msra.mxu0 0
        %541 = vmatpush.bf16.msra.mxu0 0
        %542 = vmatpush.bf16.msra.mxu0 0
        %543 = vmatpush.bf16.msra.mxu0 %v505
        %544 = vmatmul.bf16.gmra.mxu0 %v495
        %v545 = vpop.f32.mrf.mxu0
        %v546 = vadd.f32 0.0, %v545
        %v547 = vpop.f32.mrf.mxu0
        %548 = vdwg.mxu0
        %549 = vmatpush.bf16.msra.mxu0 0
        %550 = vmatpush.bf16.msra.mxu0 0
        %551 = vmatpush.bf16.msra.mxu0 0
        %552 = vmatpush.bf16.msra.mxu0 0
        %553 = vmatpush.bf16.msra.mxu0 0
        %554 = vmatpush.bf16.msra.mxu0 0
        %555 = vmatpush.bf16.msra.mxu0 0
        %556 = vmatpush.bf16.msra.mxu0 %v508
        %557 = vmatmul.bf16.gmra.mxu0 %v495
        %v558 = vpop.f32.mrf.mxu0
        %v559 = vadd.f32 0.0, %v558
        %v560 = vpop.f32.mrf.mxu0
        %561 = vdwg.mxu0
        %v563 = vsel %vm493, %v454, 0
        %v566 = vsel %vm497, %v455, 0
        %v569 = vsel %vm497, %v456, 0
        %v572 = vsel %vm497, %v457, 0
        %v575 = vsel %vm497, %v458, 0
        %577 = vmatpush.bf16.msra.mxu0 0
        %578 = vmatpush.bf16.msra.mxu0 0
        %579 = vmatpush.bf16.msra.mxu0 0
        %580 = vmatpush.bf16.msra.mxu0 0
        %581 = vmatpush.bf16.msra.mxu0 0
        %582 = vmatpush.bf16.msra.mxu0 0
        %583 = vmatpush.bf16.msra.mxu0 0
        %584 = vmatpush.bf16.msra.mxu0 %v566
        %585 = vmatmul.bf16.gmra.mxu0 %v563
        %v586 = vpop.f32.mrf.mxu0
        %v587 = vadd.f32 %v520, %v586
        %v588 = vpop.f32.mrf.mxu0
        %589 = vdwg.mxu0
        %590 = vmatpush.bf16.msra.mxu0 0
        %591 = vmatpush.bf16.msra.mxu0 0
        %592 = vmatpush.bf16.msra.mxu0 0
        %593 = vmatpush.bf16.msra.mxu0 0
        %594 = vmatpush.bf16.msra.mxu0 0
        %595 = vmatpush.bf16.msra.mxu0 0
        %596 = vmatpush.bf16.msra.mxu0 0
        %597 = vmatpush.bf16.msra.mxu0 %v569
        %598 = vmatmul.bf16.gmra.mxu0 %v563
        %v599 = vpop.f32.mrf.mxu0
        %v600 = vadd.f32 %v533, %v599
        %v601 = vpop.f32.mrf.mxu0
        %602 = vdwg.mxu0
        %603 = vmatpush.bf16.msra.mxu0 0
        %604 = vmatpush.bf16.msra.mxu0 0
        %605 = vmatpush.bf16.msra.mxu0 0
        %606 = vmatpush.bf16.msra.mxu0 0
        %607 = vmatpush.bf16.msra.mxu0 0
        %608 = vmatpush.bf16.msra.mxu0 0
        %609 = vmatpush.bf16.msra.mxu0 0
        %610 = vmatpush.bf16.msra.mxu0 %v572
        %611 = vmatmul.bf16.gmra.mxu0 %v563
        %v612 = vpop.f32.mrf.mxu0
        %v613 = vadd.f32 %v546, %v612
        %v614 = vpop.f32.mrf.mxu0
        %615 = vdwg.mxu0
        %616 = vmatpush.bf16.msra.mxu0 0
        %617 = vmatpush.bf16.msra.mxu0 0
        %618 = vmatpush.bf16.msra.mxu0 0
        %619 = vmatpush.bf16.msra.mxu0 0
        %620 = vmatpush.bf16.msra.mxu0 0
        %621 = vmatpush.bf16.msra.mxu0 0
        %622 = vmatpush.bf16.msra.mxu0 0
        %623 = vmatpush.bf16.msra.mxu0 %v575
        %624 = vmatmul.bf16.gmra.mxu0 %v563
        %v625 = vpop.f32.mrf.mxu0
        %v626 = vadd.f32 %v559, %v625
        %v627 = vpop.f32.mrf.mxu0
        %628 = vdwg.mxu0
        %629 = vrot.lane.b32.xlu0 %v421, 15
        %v630 = vpop.permute.xlu0 %629
        %631 = vrot.lane.b32.xlu0 %v422, 15
        %v632 = vpop.permute.xlu0 %631
        %633 = vrot.lane.b32.xlu0 %v423, 15
        %v634 = vpop.permute.xlu0 %633
        %635 = vrot.lane.b32.xlu0 %v424, 15
        %v636 = vpop.permute.xlu0 %635
        %vm637 = vcmp.lt.s32.totalorder %v434, 15
        %v638 = vsel %vm637, %v634, %v636
        %v639 = vsel %vm637, %v632, %v634
        %v640 = vsel %vm637, %v630, %v632
        %v641 = vsel %vm637, %v636, %v630
        %s642 = scalar_lea.vmem [#allocation5], 2
        %v643 = vld [vmem:[%s642] ss:$8 sm:$0xf]
        %v645 = vperm.slane %v643, 0
        %v646 = vperm.slane %v643, 1
        %v647 = vperm.slane %v643, 2
        %v648 = vperm.slane %v643, 3
        %v653 = vmul.f32 %v641, %v645
        %v654 = vmul.f32 %v640, %v646
        %v655 = vmul.f32 %v639, %v647
        %v656 = vmul.f32 %v638, %v648
        %s657 = scalar_lea.vmem %s4, 4
        %v658 = vld [vmem:[%s657] sm:$0x3]
        %v659 = vpack.c.bf16 %v653, %v653
        %v660 = vpack.c.bf16 %v654, %v654
        %v661 = vpack.c.bf16 %v655, %v655
        %v662 = vpack.c.bf16 %v656, %v656
        %v664 = vsel %vm493, %v658, 0
        %v667 = vsel %vm497, %v659, 0
        %v670 = vsel %vm497, %v660, 0
        %v673 = vsel %vm497, %v661, 0
        %v676 = vsel %vm497, %v662, 0
        %678 = vmatpush.bf16.msra.mxu0 0
        %679 = vmatpush.bf16.msra.mxu0 0
        %680 = vmatpush.bf16.msra.mxu0 0
        %681 = vmatpush.bf16.msra.mxu0 0
        %682 = vmatpush.bf16.msra.mxu0 0
        %683 = vmatpush.bf16.msra.mxu0 0
        %684 = vmatpush.bf16.msra.mxu0 0
        %685 = vmatpush.bf16.msra.mxu0 %v667
        %686 = vmatmul.bf16.gmra.mxu0 %v664
        %v687 = vpop.f32.mrf.mxu0
        %v688 = vadd.f32 0.0, %v687
        %v689 = vpop.f32.mrf.mxu0
        %690 = vdwg.mxu0
        %691 = vmatpush.bf16.msra.mxu0 0
        %692 = vmatpush.bf16.msra.mxu0 0
        %693 = vmatpush.bf16.msra.mxu0 0
        %694 = vmatpush.bf16.msra.mxu0 0
        %695 = vmatpush.bf16.msra.mxu0 0
        %696 = vmatpush.bf16.msra.mxu0 0
        %697 = vmatpush.bf16.msra.mxu0 0
        %698 = vmatpush.bf16.msra.mxu0 %v670
        %699 = vmatmul.bf16.gmra.mxu0 %v664
        %v700 = vpop.f32.mrf.mxu0
        %v701 = vadd.f32 0.0, %v700
        %v702 = vpop.f32.mrf.mxu0
        %703 = vdwg.mxu0
        %704 = vmatpush.bf16.msra.mxu0 0
        %705 = vmatpush.bf16.msra.mxu0 0
        %706 = vmatpush.bf16.msra.mxu0 0
        %707 = vmatpush.bf16.msra.mxu0 0
        %708 = vmatpush.bf16.msra.mxu0 0
        %709 = vmatpush.bf16.msra.mxu0 0
        %710 = vmatpush.bf16.msra.mxu0 0
        %711 = vmatpush.bf16.msra.mxu0 %v673
        %712 = vmatmul.bf16.gmra.mxu0 %v664
        %v713 = vpop.f32.mrf.mxu0
        %v714 = vadd.f32 0.0, %v713
        %v715 = vpop.f32.mrf.mxu0
        %716 = vdwg.mxu0
        %717 = vmatpush.bf16.msra.mxu0 0
        %718 = vmatpush.bf16.msra.mxu0 0
        %719 = vmatpush.bf16.msra.mxu0 0
        %720 = vmatpush.bf16.msra.mxu0 0
        %721 = vmatpush.bf16.msra.mxu0 0
        %722 = vmatpush.bf16.msra.mxu0 0
        %723 = vmatpush.bf16.msra.mxu0 0
        %724 = vmatpush.bf16.msra.mxu0 %v676
        %725 = vmatmul.bf16.gmra.mxu0 %v664
        %v726 = vpop.f32.mrf.mxu0
        %v727 = vadd.f32 0.0, %v726
        %v728 = vpop.f32.mrf.mxu0
        %729 = vdwg.mxu0
        %v730 = vadd.f32 %v587, %v688
        %v731 = vadd.f32 %v600, %v701
        %v732 = vadd.f32 %v613, %v714
        %v733 = vadd.f32 %v626, %v727
        %734 = vrot.lane.b32.xlu0 %v421, 1
        %v735 = vpop.permute.xlu0 %734
        %736 = vrot.lane.b32.xlu0 %v422, 1
        %v737 = vpop.permute.xlu0 %736
        %738 = vrot.lane.b32.xlu0 %v423, 1
        %v739 = vpop.permute.xlu0 %738
        %740 = vrot.lane.b32.xlu0 %v424, 1
        %v741 = vpop.permute.xlu0 %740
        %vm742 = vcmp.lt.s32.totalorder %v434, 1
        %v743 = vsel %vm742, %v739, %v741
        %v744 = vsel %vm742, %v737, %v739
        %v745 = vsel %vm742, %v735, %v737
        %v746 = vsel %vm742, %v741, %v735
        %s747 = scalar_lea.vmem [#allocation5], 3
        %v748 = vld [vmem:[%s747] ss:$8 sm:$0xf]
        %v750 = vperm.slane %v748, 0
        %v751 = vperm.slane %v748, 1
        %v752 = vperm.slane %v748, 2
        %v753 = vperm.slane %v748, 3
        %v758 = vmul.f32 %v746, %v750
        %v759 = vmul.f32 %v745, %v751
        %v760 = vmul.f32 %v744, %v752
        %v761 = vmul.f32 %v743, %v753
        %s762 = scalar_lea.vmem %s4, 6
        %v763 = vld [vmem:[%s762] sm:$0x3]
        %v764 = vpack.c.bf16 %v758, %v758
        %v765 = vpack.c.bf16 %v759, %v759
        %v766 = vpack.c.bf16 %v760, %v760
        %v767 = vpack.c.bf16 %v761, %v761
        %v769 = vsel %vm493, %v763, 0
        %v772 = vsel %vm497, %v764, 0
        %v775 = vsel %vm497, %v765, 0
        %v778 = vsel %vm497, %v766, 0
        %v781 = vsel %vm497, %v767, 0
        %783 = vmatpush.bf16.msra.mxu0 0
        %784 = vmatpush.bf16.msra.mxu0 0
        %785 = vmatpush.bf16.msra.mxu0 0
        %786 = vmatpush.bf16.msra.mxu0 0
        %787 = vmatpush.bf16.msra.mxu0 0
        %788 = vmatpush.bf16.msra.mxu0 0
        %789 = vmatpush.bf16.msra.mxu0 0
        %790 = vmatpush.bf16.msra.mxu0 %v772
        %791 = vmatmul.bf16.gmra.mxu0 %v769
        %v792 = vpop.f32.mrf.mxu0
        %v793 = vadd.f32 0.0, %v792
        %v794 = vpop.f32.mrf.mxu0
        %795 = vdwg.mxu0
        %796 = vmatpush.bf16.msra.mxu0 0
        %797 = vmatpush.bf16.msra.mxu0 0
        %798 = vmatpush.bf16.msra.mxu0 0
        %799 = vmatpush.bf16.msra.mxu0 0
        %800 = vmatpush.bf16.msra.mxu0 0
        %801 = vmatpush.bf16.msra.mxu0 0
        %802 = vmatpush.bf16.msra.mxu0 0
        %803 = vmatpush.bf16.msra.mxu0 %v775
        %804 = vmatmul.bf16.gmra.mxu0 %v769
        %v805 = vpop.f32.mrf.mxu0
        %v806 = vadd.f32 0.0, %v805
        %v807 = vpop.f32.mrf.mxu0
        %808 = vdwg.mxu0
        %809 = vmatpush.bf16.msra.mxu0 0
        %810 = vmatpush.bf16.msra.mxu0 0
        %811 = vmatpush.bf16.msra.mxu0 0
        %812 = vmatpush.bf16.msra.mxu0 0
        %813 = vmatpush.bf16.msra.mxu0 0
        %814 = vmatpush.bf16.msra.mxu0 0
        %815 = vmatpush.bf16.msra.mxu0 0
        %816 = vmatpush.bf16.msra.mxu0 %v778
        %817 = vmatmul.bf16.gmra.mxu0 %v769
        %v818 = vpop.f32.mrf.mxu0
        %v819 = vadd.f32 0.0, %v818
        %v820 = vpop.f32.mrf.mxu0
        %821 = vdwg.mxu0
        %822 = vmatpush.bf16.msra.mxu0 0
        %823 = vmatpush.bf16.msra.mxu0 0
        %824 = vmatpush.bf16.msra.mxu0 0
        %825 = vmatpush.bf16.msra.mxu0 0
        %826 = vmatpush.bf16.msra.mxu0 0
        %827 = vmatpush.bf16.msra.mxu0 0
        %828 = vmatpush.bf16.msra.mxu0 0
        %829 = vmatpush.bf16.msra.mxu0 %v781
        %830 = vmatmul.bf16.gmra.mxu0 %v769
        %v831 = vpop.f32.mrf.mxu0
        %v832 = vadd.f32 0.0, %v831
        %v833 = vpop.f32.mrf.mxu0
        %834 = vdwg.mxu0
        %v835 = vadd.f32 %v730, %v793
        %v836 = vadd.f32 %v731, %v806
        %v837 = vadd.f32 %v732, %v819
        %v838 = vadd.f32 %v733, %v832
        %s839 = scalar_lea.vmem %s4, 8
        %v840 = vld [vmem:[%s839] sm:$0x3]
        %v841 = vpack.c.bf16 %v421, %v421
        %v842 = vpack.c.bf16 %v422, %v422
        %v843 = vpack.c.bf16 %v423, %v423
        %v844 = vpack.c.bf16 %v424, %v424
        %v846 = vsel %vm493, %v840, 0
        %v849 = vsel %vm497, %v841, 0
        %v852 = vsel %vm497, %v842, 0
        %v855 = vsel %vm497, %v843, 0
        %v858 = vsel %vm497, %v844, 0
        %860 = vmatpush.bf16.msra.mxu0 0
        %861 = vmatpush.bf16.msra.mxu0 0
        %862 = vmatpush.bf16.msra.mxu0 0
        %863 = vmatpush.bf16.msra.mxu0 0
        %864 = vmatpush.bf16.msra.mxu0 0
        %865 = vmatpush.bf16.msra.mxu0 0
        %866 = vmatpush.bf16.msra.mxu0 0
        %867 = vmatpush.bf16.msra.mxu0 %v849
        %868 = vmatmul.bf16.gmra.mxu0 %v846
        %v869 = vpop.f32.mrf.mxu0
        %v870 = vadd.f32 0.0, %v869
        %v871 = vpop.f32.mrf.mxu0
        %872 = vdwg.mxu0
        %873 = vmatpush.bf16.msra.mxu0 0
        %874 = vmatpush.bf16.msra.mxu0 0
        %875 = vmatpush.bf16.msra.mxu0 0
        %876 = vmatpush.bf16.msra.mxu0 0
        %877 = vmatpush.bf16.msra.mxu0 0
        %878 = vmatpush.bf16.msra.mxu0 0
        %879 = vmatpush.bf16.msra.mxu0 0
        %880 = vmatpush.bf16.msra.mxu0 %v852
        %881 = vmatmul.bf16.gmra.mxu0 %v846
        %v882 = vpop.f32.mrf.mxu0
        %v883 = vadd.f32 0.0, %v882
        %v884 = vpop.f32.mrf.mxu0
        %885 = vdwg.mxu0
        %886 = vmatpush.bf16.msra.mxu0 0
        %887 = vmatpush.bf16.msra.mxu0 0
        %888 = vmatpush.bf16.msra.mxu0 0
        %889 = vmatpush.bf16.msra.mxu0 0
        %890 = vmatpush.bf16.msra.mxu0 0
        %891 = vmatpush.bf16.msra.mxu0 0
        %892 = vmatpush.bf16.msra.mxu0 0
        %893 = vmatpush.bf16.msra.mxu0 %v855
        %894 = vmatmul.bf16.gmra.mxu0 %v846
        %v895 = vpop.f32.mrf.mxu0
        %v896 = vadd.f32 0.0, %v895
        %v897 = vpop.f32.mrf.mxu0
        %898 = vdwg.mxu0
        %899 = vmatpush.bf16.msra.mxu0 0
        %900 = vmatpush.bf16.msra.mxu0 0
        %901 = vmatpush.bf16.msra.mxu0 0
        %902 = vmatpush.bf16.msra.mxu0 0
        %903 = vmatpush.bf16.msra.mxu0 0
        %904 = vmatpush.bf16.msra.mxu0 0
        %905 = vmatpush.bf16.msra.mxu0 0
        %906 = vmatpush.bf16.msra.mxu0 %v858
        %907 = vmatmul.bf16.gmra.mxu0 %v846
        %v908 = vpop.f32.mrf.mxu0
        %v909 = vadd.f32 0.0, %v908
        %v910 = vpop.f32.mrf.mxu0
        %911 = vdwg.mxu0
        %v912 = vadd.f32 %v835, %v870
        %v913 = vadd.f32 %v836, %v883
        %v914 = vadd.f32 %v837, %v896
        %v915 = vadd.f32 %v838, %v909
        %916 = vrot.lane.b32.xlu0 %v421, 127
        %v917 = vpop.permute.xlu0 %916
        %918 = vrot.lane.b32.xlu0 %v422, 127
        %v919 = vpop.permute.xlu0 %918
        %920 = vrot.lane.b32.xlu0 %v423, 127
        %v921 = vpop.permute.xlu0 %920
        %922 = vrot.lane.b32.xlu0 %v424, 127
        %v923 = vpop.permute.xlu0 %922
        %vm924 = vcmp.lt.s32.totalorder %v434, 127
        %v925 = vsel %vm924, %v921, %v923
        %v926 = vsel %vm924, %v919, %v921
        %v927 = vsel %vm924, %v917, %v919
        %v928 = vsel %vm924, %v923, %v917
        %s929 = scalar_lea.vmem [#allocation5], 5
        %v930 = vld [vmem:[%s929] ss:$8 sm:$0xf]
        %v932 = vperm.slane %v930, 0
        %v933 = vperm.slane %v930, 1
        %v934 = vperm.slane %v930, 2
        %v935 = vperm.slane %v930, 3
        %v940 = vmul.f32 %v927, %v932
        %v941 = vmul.f32 %v926, %v933
        %v942 = vmul.f32 %v925, %v934
        %v943 = vmul.f32 %v928, %v935
        %s944 = scalar_lea.vmem %s4, 10
        %v945 = vld [vmem:[%s944] sm:$0x3]
        %v946 = vpack.c.bf16 %v940, %v940
        %v947 = vpack.c.bf16 %v941, %v941
        %v948 = vpack.c.bf16 %v942, %v942
        %v949 = vpack.c.bf16 %v943, %v943
        %v951 = vsel %vm493, %v945, 0
        %v954 = vsel %vm497, %v946, 0
        %v957 = vsel %vm497, %v947, 0
        %v960 = vsel %vm497, %v948, 0
        %v963 = vsel %vm497, %v949, 0
        %965 = vmatpush.bf16.msra.mxu0 0
        %966 = vmatpush.bf16.msra.mxu0 0
        %967 = vmatpush.bf16.msra.mxu0 0
        %968 = vmatpush.bf16.msra.mxu0 0
        %969 = vmatpush.bf16.msra.mxu0 0
        %970 = vmatpush.bf16.msra.mxu0 0
        %971 = vmatpush.bf16.msra.mxu0 0
        %972 = vmatpush.bf16.msra.mxu0 %v954
        %973 = vmatmul.bf16.gmra.mxu0 %v951
        %v974 = vpop.f32.mrf.mxu0
        %v975 = vadd.f32 0.0, %v974
        %v976 = vpop.f32.mrf.mxu0
        %977 = vdwg.mxu0
        %978 = vmatpush.bf16.msra.mxu0 0
        %979 = vmatpush.bf16.msra.mxu0 0
        %980 = vmatpush.bf16.msra.mxu0 0
        %981 = vmatpush.bf16.msra.mxu0 0
        %982 = vmatpush.bf16.msra.mxu0 0
        %983 = vmatpush.bf16.msra.mxu0 0
        %984 = vmatpush.bf16.msra.mxu0 0
        %985 = vmatpush.bf16.msra.mxu0 %v957
        %986 = vmatmul.bf16.gmra.mxu0 %v951
        %v987 = vpop.f32.mrf.mxu0
        %v988 = vadd.f32 0.0, %v987
        %v989 = vpop.f32.mrf.mxu0
        %990 = vdwg.mxu0
        %991 = vmatpush.bf16.msra.mxu0 0
        %992 = vmatpush.bf16.msra.mxu0 0
        %993 = vmatpush.bf16.msra.mxu0 0
        %994 = vmatpush.bf16.msra.mxu0 0
        %995 = vmatpush.bf16.msra.mxu0 0
        %996 = vmatpush.bf16.msra.mxu0 0
        %997 = vmatpush.bf16.msra.mxu0 0
        %998 = vmatpush.bf16.msra.mxu0 %v960
        %999 = vmatmul.bf16.gmra.mxu0 %v951
        %v1000 = vpop.f32.mrf.mxu0
        %v1001 = vadd.f32 0.0, %v1000
        %v1002 = vpop.f32.mrf.mxu0
        %1003 = vdwg.mxu0
        %1004 = vmatpush.bf16.msra.mxu0 0
        %1005 = vmatpush.bf16.msra.mxu0 0
        %1006 = vmatpush.bf16.msra.mxu0 0
        %1007 = vmatpush.bf16.msra.mxu0 0
        %1008 = vmatpush.bf16.msra.mxu0 0
        %1009 = vmatpush.bf16.msra.mxu0 0
        %1010 = vmatpush.bf16.msra.mxu0 0
        %1011 = vmatpush.bf16.msra.mxu0 %v963
        %1012 = vmatmul.bf16.gmra.mxu0 %v951
        %v1013 = vpop.f32.mrf.mxu0
        %v1014 = vadd.f32 0.0, %v1013
        %v1015 = vpop.f32.mrf.mxu0
        %1016 = vdwg.mxu0
        %v1017 = vadd.f32 %v912, %v975
        %v1018 = vadd.f32 %v913, %v988
        %v1019 = vadd.f32 %v914, %v1001
        %v1020 = vadd.f32 %v915, %v1014
        %1021 = vrot.lane.b32.xlu0 %v421, 113
        %v1022 = vpop.permute.xlu0 %1021
        %1023 = vrot.lane.b32.xlu0 %v422, 113
        %v1024 = vpop.permute.xlu0 %1023
        %1025 = vrot.lane.b32.xlu0 %v423, 113
        %v1026 = vpop.permute.xlu0 %1025
        %1027 = vrot.lane.b32.xlu0 %v424, 113
        %v1028 = vpop.permute.xlu0 %1027
        %vm1029 = vcmp.lt.s32.totalorder %v434, 113
        %v1030 = vsel %vm1029, %v1026, %v1028
        %v1031 = vsel %vm1029, %v1024, %v1026
        %v1032 = vsel %vm1029, %v1022, %v1024
        %v1033 = vsel %vm1029, %v1028, %v1022
        %s1034 = scalar_lea.vmem [#allocation5], 6
        %v1035 = vld [vmem:[%s1034] ss:$8 sm:$0xf]
        %v1037 = vperm.slane %v1035, 0
        %v1038 = vperm.slane %v1035, 1
        %v1039 = vperm.slane %v1035, 2
        %v1040 = vperm.slane %v1035, 3
        %v1045 = vmul.f32 %v1032, %v1037
        %v1046 = vmul.f32 %v1031, %v1038
        %v1047 = vmul.f32 %v1030, %v1039
        %v1048 = vmul.f32 %v1033, %v1040
        %s1049 = scalar_lea.vmem %s4, 12
        %v1050 = vld [vmem:[%s1049] sm:$0x3]
        %v1051 = vpack.c.bf16 %v1045, %v1045
        %v1052 = vpack.c.bf16 %v1046, %v1046
        %v1053 = vpack.c.bf16 %v1047, %v1047
        %v1054 = vpack.c.bf16 %v1048, %v1048
        %v1056 = vsel %vm493, %v1050, 0
        %v1059 = vsel %vm497, %v1051, 0
        %v1062 = vsel %vm497, %v1052, 0
        %v1065 = vsel %vm497, %v1053, 0
        %v1068 = vsel %vm497, %v1054, 0
        %1070 = vmatpush.bf16.msra.mxu0 0
        %1071 = vmatpush.bf16.msra.mxu0 0
        %1072 = vmatpush.bf16.msra.mxu0 0
        %1073 = vmatpush.bf16.msra.mxu0 0
        %1074 = vmatpush.bf16.msra.mxu0 0
        %1075 = vmatpush.bf16.msra.mxu0 0
        %1076 = vmatpush.bf16.msra.mxu0 0
        %1077 = vmatpush.bf16.msra.mxu0 %v1059
        %1078 = vmatmul.bf16.gmra.mxu0 %v1056
        %v1079 = vpop.f32.mrf.mxu0
        %v1080 = vadd.f32 0.0, %v1079
        %v1081 = vpop.f32.mrf.mxu0
        %1082 = vdwg.mxu0
        %1083 = vmatpush.bf16.msra.mxu0 0
        %1084 = vmatpush.bf16.msra.mxu0 0
        %1085 = vmatpush.bf16.msra.mxu0 0
        %1086 = vmatpush.bf16.msra.mxu0 0
        %1087 = vmatpush.bf16.msra.mxu0 0
        %1088 = vmatpush.bf16.msra.mxu0 0
        %1089 = vmatpush.bf16.msra.mxu0 0
        %1090 = vmatpush.bf16.msra.mxu0 %v1062
        %1091 = vmatmul.bf16.gmra.mxu0 %v1056
        %v1092 = vpop.f32.mrf.mxu0
        %v1093 = vadd.f32 0.0, %v1092
        %v1094 = vpop.f32.mrf.mxu0
        %1095 = vdwg.mxu0
        %1096 = vmatpush.bf16.msra.mxu0 0
        %1097 = vmatpush.bf16.msra.mxu0 0
        %1098 = vmatpush.bf16.msra.mxu0 0
        %1099 = vmatpush.bf16.msra.mxu0 0
        %1100 = vmatpush.bf16.msra.mxu0 0
        %1101 = vmatpush.bf16.msra.mxu0 0
        %1102 = vmatpush.bf16.msra.mxu0 0
        %1103 = vmatpush.bf16.msra.mxu0 %v1065
        %1104 = vmatmul.bf16.gmra.mxu0 %v1056
        %v1105 = vpop.f32.mrf.mxu0
        %v1106 = vadd.f32 0.0, %v1105
        %v1107 = vpop.f32.mrf.mxu0
        %1108 = vdwg.mxu0
        %1109 = vmatpush.bf16.msra.mxu0 0
        %1110 = vmatpush.bf16.msra.mxu0 0
        %1111 = vmatpush.bf16.msra.mxu0 0
        %1112 = vmatpush.bf16.msra.mxu0 0
        %1113 = vmatpush.bf16.msra.mxu0 0
        %1114 = vmatpush.bf16.msra.mxu0 0
        %1115 = vmatpush.bf16.msra.mxu0 0
        %1116 = vmatpush.bf16.msra.mxu0 %v1068
        %1117 = vmatmul.bf16.gmra.mxu0 %v1056
        %v1118 = vpop.f32.mrf.mxu0
        %v1119 = vadd.f32 0.0, %v1118
        %v1120 = vpop.f32.mrf.mxu0
        %1121 = vdwg.mxu0
        %v1122 = vadd.f32 %v1017, %v1080
        %v1123 = vadd.f32 %v1018, %v1093
        %v1124 = vadd.f32 %v1019, %v1106
        %v1125 = vadd.f32 %v1020, %v1119
        %1126 = vrot.lane.b32.xlu0 %v421, 112
        %v1127 = vpop.permute.xlu0 %1126
        %1128 = vrot.lane.b32.xlu0 %v422, 112
        %v1129 = vpop.permute.xlu0 %1128
        %1130 = vrot.lane.b32.xlu0 %v423, 112
        %v1131 = vpop.permute.xlu0 %1130
        %1132 = vrot.lane.b32.xlu0 %v424, 112
        %v1133 = vpop.permute.xlu0 %1132
        %vm1134 = vcmp.lt.s32.totalorder %v434, 112
        %v1135 = vsel %vm1134, %v1131, %v1133
        %v1136 = vsel %vm1134, %v1129, %v1131
        %v1137 = vsel %vm1134, %v1127, %v1129
        %v1138 = vsel %vm1134, %v1133, %v1127
        %s1139 = scalar_lea.vmem [#allocation5], 7
        %v1140 = vld [vmem:[%s1139] ss:$8 sm:$0xf]
        %v1142 = vperm.slane %v1140, 0
        %v1143 = vperm.slane %v1140, 1
        %v1144 = vperm.slane %v1140, 2
        %v1145 = vperm.slane %v1140, 3
        %v1150 = vmul.f32 %v1137, %v1142
        %v1151 = vmul.f32 %v1136, %v1143
        %v1152 = vmul.f32 %v1135, %v1144
        %v1153 = vmul.f32 %v1138, %v1145
        %s1154 = scalar_lea.vmem %s4, 14
        %v1155 = vld [vmem:[%s1154] sm:$0x3]
        %v1156 = vpack.c.bf16 %v1150, %v1150
        %v1157 = vpack.c.bf16 %v1151, %v1151
        %v1158 = vpack.c.bf16 %v1152, %v1152
        %v1159 = vpack.c.bf16 %v1153, %v1153
        %v1161 = vsel %vm493, %v1155, 0
        %v1164 = vsel %vm497, %v1156, 0
        %v1167 = vsel %vm497, %v1157, 0
        %v1170 = vsel %vm497, %v1158, 0
        %v1173 = vsel %vm497, %v1159, 0
        %1175 = vmatpush.bf16.msra.mxu0 0
        %1176 = vmatpush.bf16.msra.mxu0 0
        %1177 = vmatpush.bf16.msra.mxu0 0
        %1178 = vmatpush.bf16.msra.mxu0 0
        %1179 = vmatpush.bf16.msra.mxu0 0
        %1180 = vmatpush.bf16.msra.mxu0 0
        %1181 = vmatpush.bf16.msra.mxu0 0
        %1182 = vmatpush.bf16.msra.mxu0 %v1164
        %1183 = vmatmul.bf16.gmra.mxu0 %v1161
        %v1184 = vpop.f32.mrf.mxu0
        %v1185 = vadd.f32 0.0, %v1184
        %v1186 = vpop.f32.mrf.mxu0
        %1187 = vdwg.mxu0
        %1188 = vmatpush.bf16.msra.mxu0 0
        %1189 = vmatpush.bf16.msra.mxu0 0
        %1190 = vmatpush.bf16.msra.mxu0 0
        %1191 = vmatpush.bf16.msra.mxu0 0
        %1192 = vmatpush.bf16.msra.mxu0 0
        %1193 = vmatpush.bf16.msra.mxu0 0
        %1194 = vmatpush.bf16.msra.mxu0 0
        %1195 = vmatpush.bf16.msra.mxu0 %v1167
        %1196 = vmatmul.bf16.gmra.mxu0 %v1161
        %v1197 = vpop.f32.mrf.mxu0
        %v1198 = vadd.f32 0.0, %v1197
        %v1199 = vpop.f32.mrf.mxu0
        %1200 = vdwg.mxu0
        %1201 = vmatpush.bf16.msra.mxu0 0
        %1202 = vmatpush.bf16.msra.mxu0 0
        %1203 = vmatpush.bf16.msra.mxu0 0
        %1204 = vmatpush.bf16.msra.mxu0 0
        %1205 = vmatpush.bf16.msra.mxu0 0
        %1206 = vmatpush.bf16.msra.mxu0 0
        %1207 = vmatpush.bf16.msra.mxu0 0
        %1208 = vmatpush.bf16.msra.mxu0 %v1170
        %1209 = vmatmul.bf16.gmra.mxu0 %v1161
        %v1210 = vpop.f32.mrf.mxu0
        %v1211 = vadd.f32 0.0, %v1210
        %v1212 = vpop.f32.mrf.mxu0
        %1213 = vdwg.mxu0
        %1214 = vmatpush.bf16.msra.mxu0 0
        %1215 = vmatpush.bf16.msra.mxu0 0
        %1216 = vmatpush.bf16.msra.mxu0 0
        %1217 = vmatpush.bf16.msra.mxu0 0
        %1218 = vmatpush.bf16.msra.mxu0 0
        %1219 = vmatpush.bf16.msra.mxu0 0
        %1220 = vmatpush.bf16.msra.mxu0 0
        %1221 = vmatpush.bf16.msra.mxu0 %v1173
        %1222 = vmatmul.bf16.gmra.mxu0 %v1161
        %v1223 = vpop.f32.mrf.mxu0
        %v1224 = vadd.f32 0.0, %v1223
        %v1225 = vpop.f32.mrf.mxu0
        %1226 = vdwg.mxu0
        %v1227 = vadd.f32 %v1122, %v1185
        %v1228 = vadd.f32 %v1123, %v1198
        %v1229 = vadd.f32 %v1124, %v1211
        %v1230 = vadd.f32 %v1125, %v1224
        %1231 = vrot.lane.b32.xlu0 %v421, 111
        %v1232 = vpop.permute.xlu0 %1231
        %1233 = vrot.lane.b32.xlu0 %v422, 111
        %v1234 = vpop.permute.xlu0 %1233
        %1235 = vrot.lane.b32.xlu0 %v423, 111
        %v1236 = vpop.permute.xlu0 %1235
        %1237 = vrot.lane.b32.xlu0 %v424, 111
        %v1238 = vpop.permute.xlu0 %1237
        %vm1239 = vcmp.lt.s32.totalorder %v434, 111
        %v1240 = vsel %vm1239, %v1236, %v1238
        %v1241 = vsel %vm1239, %v1234, %v1236
        %v1242 = vsel %vm1239, %v1232, %v1234
        %v1243 = vsel %vm1239, %v1238, %v1232
        %s1244 = scalar_lea.vmem [#allocation5], 32
        %v1245 = vld [vmem:[%s1244] ss:$8 sm:$0xf]
        %v1247 = vperm.slane %v1245, 0
        %v1248 = vperm.slane %v1245, 1
        %v1249 = vperm.slane %v1245, 2
        %v1250 = vperm.slane %v1245, 3
        %v1255 = vmul.f32 %v1242, %v1247
        %v1256 = vmul.f32 %v1241, %v1248
        %v1257 = vmul.f32 %v1240, %v1249
        %v1258 = vmul.f32 %v1243, %v1250
        %s1259 = scalar_lea.vmem %s4, 16
        %v1260 = vld [vmem:[%s1259] sm:$0x3]
        %v1261 = vpack.c.bf16 %v1255, %v1255
        %v1262 = vpack.c.bf16 %v1256, %v1256
        %v1263 = vpack.c.bf16 %v1257, %v1257
        %v1264 = vpack.c.bf16 %v1258, %v1258
        %v1266 = vsel %vm493, %v1260, 0
        %v1269 = vsel %vm497, %v1261, 0
        %v1272 = vsel %vm497, %v1262, 0
        %v1275 = vsel %vm497, %v1263, 0
        %v1278 = vsel %vm497, %v1264, 0
        %1280 = vmatpush.bf16.msra.mxu0 0
        %1281 = vmatpush.bf16.msra.mxu0 0
        %1282 = vmatpush.bf16.msra.mxu0 0
        %1283 = vmatpush.bf16.msra.mxu0 0
        %1284 = vmatpush.bf16.msra.mxu0 0
        %1285 = vmatpush.bf16.msra.mxu0 0
        %1286 = vmatpush.bf16.msra.mxu0 0
        %1287 = vmatpush.bf16.msra.mxu0 %v1269
        %1288 = vmatmul.bf16.gmra.mxu0 %v1266
        %v1289 = vpop.f32.mrf.mxu0
        %v1290 = vadd.f32 0.0, %v1289
        %v1291 = vpop.f32.mrf.mxu0
        %1292 = vdwg.mxu0
        %1293 = vmatpush.bf16.msra.mxu0 0
        %1294 = vmatpush.bf16.msra.mxu0 0
        %1295 = vmatpush.bf16.msra.mxu0 0
        %1296 = vmatpush.bf16.msra.mxu0 0
        %1297 = vmatpush.bf16.msra.mxu0 0
        %1298 = vmatpush.bf16.msra.mxu0 0
        %1299 = vmatpush.bf16.msra.mxu0 0
        %1300 = vmatpush.bf16.msra.mxu0 %v1272
        %1301 = vmatmul.bf16.gmra.mxu0 %v1266
        %v1302 = vpop.f32.mrf.mxu0
        %v1303 = vadd.f32 0.0, %v1302
        %v1304 = vpop.f32.mrf.mxu0
        %1305 = vdwg.mxu0
        %1306 = vmatpush.bf16.msra.mxu0 0
        %1307 = vmatpush.bf16.msra.mxu0 0
        %1308 = vmatpush.bf16.msra.mxu0 0
        %1309 = vmatpush.bf16.msra.mxu0 0
        %1310 = vmatpush.bf16.msra.mxu0 0
        %1311 = vmatpush.bf16.msra.mxu0 0
        %1312 = vmatpush.bf16.msra.mxu0 0
        %1313 = vmatpush.bf16.msra.mxu0 %v1275
        %1314 = vmatmul.bf16.gmra.mxu0 %v1266
        %v1315 = vpop.f32.mrf.mxu0
        %v1316 = vadd.f32 0.0, %v1315
        %v1317 = vpop.f32.mrf.mxu0
        %1318 = vdwg.mxu0
        %1319 = vmatpush.bf16.msra.mxu0 0
        %1320 = vmatpush.bf16.msra.mxu0 0
        %1321 = vmatpush.bf16.msra.mxu0 0
        %1322 = vmatpush.bf16.msra.mxu0 0
        %1323 = vmatpush.bf16.msra.mxu0 0
        %1324 = vmatpush.bf16.msra.mxu0 0
        %1325 = vmatpush.bf16.msra.mxu0 0
        %1326 = vmatpush.bf16.msra.mxu0 %v1278
        %1327 = vmatmul.bf16.gmra.mxu0 %v1266
        %v1328 = vpop.f32.mrf.mxu0
        %v1329 = vadd.f32 0.0, %v1328
        %v1330 = vpop.f32.mrf.mxu0
        %1331 = vdwg.mxu0
        %v1332 = vadd.f32 %v1227, %v1290
        %v1333 = vadd.f32 %v1228, %v1303
        %v1334 = vadd.f32 %v1229, %v1316
        %v1335 = vadd.f32 %v1230, %v1329
        %v1336 = vld [vmem:[%s5] sm:$0xf]
        %1338 = vset.pattern.permute.xlu0 0
        %1339 = vperm.xlu0 %1338, %v1336
        %v1340 = vpop.permute.xlu0 %1339
        %v1342 = vadd.f32 %v1332, %v1340
        %v1343 = vadd.f32 %v1333, %v1340
        %v1344 = vadd.f32 %v1334, %v1340
        %v1345 = vadd.f32 %v1335, %v1340
        %v1346 = vmax.f32 %v1342, 0.0
        %v1347 = vmax.f32 %v1343, 0.0
        %v1348 = vmax.f32 %v1344, 0.0
        %v1349 = vmax.f32 %v1345, 0.0
        %v1350 = vld [vmem:[%s6] sm:$0xf]
        %v1351 = vld [vmem:[%s6 + $0x4] sm:$0xf]
        %v1352 = vpack.c.bf16 %v1346, %v1346
        %v1353 = vpack.c.bf16 %v1347, %v1347
        %v1354 = vpack.c.bf16 %v1348, %v1348
        %v1355 = vpack.c.bf16 %v1349, %v1349
        %v1356 = vld [vmem:[%s7] sm:$0xff]
        %v1357 = vld [vmem:[%s7 + $0x8] sm:$0xff]
        %1359 = vset.pattern.permute.xlu0 0
        %1360 = vperm.xlu0 %1359, %v1356
        %v1361 = vpop.permute.xlu0 %1360
        %1364 = vset.pattern.permute.xlu0 0
        %1365 = vperm.xlu0 %1364, %v1357
        %v1366 = vpop.permute.xlu0 %1365
        %v1370 = vunpack.c.l.b16 %v1350
        %v1371 = vunpack.c.l.b16 %v1351
        %v1372 = vpack.c.b16 %v1371, %v1370
        %v1374 = vsel %vm493, %v1372, 0
        %v1377 = vsel %vm497, %v1352, 0
        %v1380 = vsel %vm497, %v1353, 0
        %v1383 = vsel %vm497, %v1354, 0
        %v1386 = vsel %vm497, %v1355, 0
        %1388 = vmatpush.bf16.msra.mxu0 0
        %1389 = vmatpush.bf16.msra.mxu0 0
        %1390 = vmatpush.bf16.msra.mxu0 0
        %1391 = vmatpush.bf16.msra.mxu0 0
        %1392 = vmatpush.bf16.msra.mxu0 0
        %1393 = vmatpush.bf16.msra.mxu0 0
        %1394 = vmatpush.bf16.msra.mxu0 0
        %1395 = vmatpush.bf16.msra.mxu0 %v1377
        %1396 = vmatmul.bf16.gmra.mxu0 %v1374
        %v1397 = vpop.f32.mrf.mxu0
        %v1398 = vadd.f32 %v1361, %v1397
        %v1399 = vpop.f32.mrf.mxu0
        %v1400 = vadd.f32 %v1366, %v1399
        %1401 = vdwg.mxu0
        %1402 = vmatpush.bf16.msra.mxu0 0
        %1403 = vmatpush.bf16.msra.mxu0 0
        %1404 = vmatpush.bf16.msra.mxu0 0
        %1405 = vmatpush.bf16.msra.mxu0 0
        %1406 = vmatpush.bf16.msra.mxu0 0
        %1407 = vmatpush.bf16.msra.mxu0 0
        %1408 = vmatpush.bf16.msra.mxu0 0
        %1409 = vmatpush.bf16.msra.mxu0 %v1380
        %1410 = vmatmul.bf16.gmra.mxu0 %v1374
        %v1411 = vpop.f32.mrf.mxu0
        %v1412 = vadd.f32 %v1361, %v1411
        %v1413 = vpop.f32.mrf.mxu0
        %v1414 = vadd.f32 %v1366, %v1413
        %1415 = vdwg.mxu0
        %1416 = vmatpush.bf16.msra.mxu0 0
        %1417 = vmatpush.bf16.msra.mxu0 0
        %1418 = vmatpush.bf16.msra.mxu0 0
        %1419 = vmatpush.bf16.msra.mxu0 0
        %1420 = vmatpush.bf16.msra.mxu0 0
        %1421 = vmatpush.bf16.msra.mxu0 0
        %1422 = vmatpush.bf16.msra.mxu0 0
        %1423 = vmatpush.bf16.msra.mxu0 %v1383
        %1424 = vmatmul.bf16.gmra.mxu0 %v1374
        %v1425 = vpop.f32.mrf.mxu0
        %v1426 = vadd.f32 %v1361, %v1425
        %v1427 = vpop.f32.mrf.mxu0
        %v1428 = vadd.f32 %v1366, %v1427
        %1429 = vdwg.mxu0
        %1430 = vmatpush.bf16.msra.mxu0 0
        %1431 = vmatpush.bf16.msra.mxu0 0
        %1432 = vmatpush.bf16.msra.mxu0 0
        %1433 = vmatpush.bf16.msra.mxu0 0
        %1434 = vmatpush.bf16.msra.mxu0 0
        %1435 = vmatpush.bf16.msra.mxu0 0
        %1436 = vmatpush.bf16.msra.mxu0 0
        %1437 = vmatpush.bf16.msra.mxu0 %v1386
        %1438 = vmatmul.bf16.gmra.mxu0 %v1374
        %v1439 = vpop.f32.mrf.mxu0
        %v1440 = vadd.f32 %v1361, %v1439
        %v1441 = vpop.f32.mrf.mxu0
        %v1442 = vadd.f32 %v1366, %v1441
        %1443 = vdwg.mxu0
        %v1444 = vadd.f32 %v1398, %v346
        %v1445 = vadd.f32 %v1412, %v347
        %v1446 = vadd.f32 %v1426, %v348
        %v1447 = vadd.f32 %v1440, %v349
        %v1448 = vadd.f32 %v1400, %v350
        %v1449 = vadd.f32 %v1414, %v351
        %v1450 = vadd.f32 %v1428, %v352
        %v1451 = vadd.f32 %v1442, %v353
        %v1452 = vmax.f32 %v1444, 0.0
        %v1453 = vmax.f32 %v1445, 0.0
        %v1454 = vmax.f32 %v1446, 0.0
        %v1455 = vmax.f32 %v1447, 0.0
        %v1456 = vmax.f32 %v1448, 0.0
        %v1457 = vmax.f32 %v1449, 0.0
        %v1458 = vmax.f32 %v1450, 0.0
        %v1459 = vmax.f32 %v1451, 0.0
        %1460 = vst [vmem:[%s342] sm:$0xff] %v1452
        %1461 = vst [vmem:[%s342 + $0x8] sm:$0xff] %v1453
        %1462 = vst [vmem:[%s342 + $0x10] sm:$0xff] %v1454
        %1463 = vst [vmem:[%s342 + $0x18] sm:$0xff] %v1455
        %1464 = vst [vmem:[%s342 + $0x20] sm:$0xff] %v1456
        %1465 = vst [vmem:[%s342 + $0x28] sm:$0xff] %v1457
        %1466 = vst [vmem:[%s342 + $0x30] sm:$0xff] %v1458
        %1467 = vst [vmem:[%s342 + $0x38] sm:$0xff] %v1459
        %s1468 = sand.u32 %s207, 1
        %s1469 = scalar_lea.sflag [#allocation4], %s1468
        %s1470 = sand.u32 %s207, 1
        %s1471 = smul.addr %s1470, 64
        %s1472 = scalar_lea.vmem [#allocation7], %s1471
        // Predicated region
        $region61: #{tpu_custom_call.1} parent=51 // pred_check
          %p1473 = pneg %p217
        $region62: #{tpu_custom_call.1} parent=51 // pred_check_branch
          %1475 = sbr.rel (%p1473) target = $region64
        $region63: #{tpu_custom_call.1} parent=51 // pred_region
          %s1476 = smul.u32 4, %s26
          %1478 = vsyncadd %s1469, 0
          %s1479 = smul.addr %s1476, 8
          %s1480 = scalar_lea.hbm %s8, %s1479
          %s1481 = sshll.u32 %s1472, 4
          %s1482 = int_to_ptr.vmem [resolvable:$true] %s1481
          %s1483 = sshll.u32 %s1480, 4
          %s1484 = int_to_ptr.hbm [resolvable:$true] %s1483
          %1489 = dma.vmem_to_hbm [thread:$0]  %s1482, 1024, %s1484, %s1469, 512, 1024, 32
        $region64: #{tpu_custom_call.1} parent=51 // pred_fallthru
          _
      $region52: #{tpu_custom_call.1} parent=5 // pred_fallthru
        _
      %p1490 = scmp.le.s32.totalorder 2, %s21
      // Predicated region
      $region65: #{tpu_custom_call.1} parent=5 // pred_check
        %p1491 = pneg %p1490
      $region66: #{tpu_custom_call.1} parent=5 // pred_check_branch
        %1493 = sbr.rel (%p1491) target = $region68
      $region67: #{tpu_custom_call.1} parent=5 // pred_region
        %s1494 = ssub.s32 %s21, 2
        // Predicated region
        $region69: #{tpu_custom_call.1} parent=67 // pred_check
          %p1495 = pneg %p223
        $region70: #{tpu_custom_call.1} parent=67 // pred_check_branch
          %1497 = sbr.rel (%p1495) target = $region72
        $region71: #{tpu_custom_call.1} parent=67 // pred_region
          %s1498 = sand.u32 %s208, 1
          %s1499 = scalar_lea.sflag [#allocation4], %s1498
          %s1500 = sand.u32 %s208, 1
          %s1501 = smul.addr %s1500, 64
          %s1502 = scalar_lea.vmem [#allocation7], %s1501
          %1504 = dma.done %s1499, 1024
        $region72: #{tpu_custom_call.1} parent=67 // pred_fallthru
          _
      $region68: #{tpu_custom_call.1} parent=5 // pred_fallthru
        _
    $region6: #{tpu_custom_call.1} parent=1 // loop_footer
      %s25 = sadd.s32 1, %s21
    $region7: #{tpu_custom_call.1} parent=1 // loop_footer_branch
      %20 = sbr.rel target = $region3
    $region8: #{tpu_custom_call.1} parent=1 // loop_exit
      _
    %1505 = vsyncpa [#allocation3], 1
    %s1506 = scalar_lea.sflag [#allocation3], 1
    %1507 = vsyncpa %s1506, 1
    %1508 = vsyncpa [#allocation6], 1
    %1509 = vsyncpa [#allocation4], 1
    %s1510 = scalar_lea.sflag [#allocation4], 1
    %1511 = vsyncpa %s1510, 1

</llo_original>
